<compile_context>
chip_gen: v5e
topology: v5e:2x2
jax: 0.10.0
libtpu: 0.0.40
codegen_flags: <defaults>
</compile_context>

<pallas_src>
import functools

import jax
import jax.numpy as jnp
from jax.experimental import pallas as pl
from jax.experimental.pallas import tpu as pltpu


def _openmamba_block_kernel(
    # inputs
    seq_ref,                                            # (R, d_model) bf16, R = t_blk*B, t-major rows
    wz_ref, wx_ref, wb_ref, wc_ref, wdt_ref,            # bf16 in_proj column segments (d_model, ·)
    tapx_ref, biasx_ref, tapb_ref, biasb_ref, tapc_ref, biasc_ref,  # f32 conv tap/bias per segment
    dt_bias_ref, head2ch_ref, a_ch_ref, d_ch_ref, norm_w_ref,       # f32 vectors / 0-1 matrix
    wout_ref,                                           # (d_inner, d_model) bf16
    # outputs
    out_ref,                                            # (R, d_model) f32
    states_ref,                                         # (t_blk, B, d_state, d_inner)
    # scratch
    state_scr,                                          # (B, d_state, d_inner) f32, carried across blocks
    y_scr,                                              # (R, d_inner) f32
    *, t_blk, batch, eps):

    @pl.when(pl.program_id(0) == 0)
    def _():
        state_scr[...] = jnp.zeros_like(state_scr)

    u = seq_ref[...]                                                      # (R, d_model) bf16

    # ---- non-recurrent work, batched over the whole T_BLK*B block (MXU) ----
    z_all = jnp.dot(u, wz_ref[...], preferred_element_type=jnp.float32)   # (R, d_inner)
    x_all = jnp.dot(u, wx_ref[...], preferred_element_type=jnp.float32)   # (R, d_inner)
    b_all = jnp.dot(u, wb_ref[...], preferred_element_type=jnp.float32)   # (R, d_state)
    c_all = jnp.dot(u, wc_ref[...], preferred_element_type=jnp.float32)   # (R, d_state)
    dt_raw = jnp.dot(u, wdt_ref[...], preferred_element_type=jnp.float32) # (R, nheads)

    # seqlen==1 causal depthwise conv (left zero-pad => only the last tap) + SiLU.
    x_all = x_all * tapx_ref[...] + biasx_ref[...]
    b_all = b_all * tapb_ref[...] + biasb_ref[...]
    c_all = c_all * tapc_ref[...] + biasc_ref[...]
    x_all = x_all * jax.nn.sigmoid(x_all)
    b_all = b_all * jax.nn.sigmoid(b_all)
    c_all = c_all * jax.nn.sigmoid(c_all)

    dt_h = jax.nn.softplus(dt_raw + dt_bias_ref[...])                     # (R, nheads)
    # per-head dt -> per-channel dt via a 0/1 matmul (exact; avoids in-kernel reshape)
    dt_c = jnp.dot(dt_h, head2ch_ref[...], preferred_element_type=jnp.float32)  # (R, d_inner)

    dA_all = jnp.exp(dt_c * a_ch_ref[...])                                # (R, d_inner)
    dtx_all = dt_c * x_all                                                # (R, d_inner)
    dx_all = d_ch_ref[...] * x_all                                        # (R, d_inner)  D*x skip term
    sz_all = z_all * jax.nn.sigmoid(z_all)                                # silu(z)

    # ---- sequential recurrence over the t_blk timesteps of this block ----
    prev = state_scr[...]                                                 # (B, d_state, d_inner)
    for s in range(t_blk):
        r0 = s * batch
        dA_s = dA_all[r0:r0 + batch, :]                                   # (B, d_inner)
        dtx_s = dtx_all[r0:r0 + batch, :]                                 # (B, d_inner)
        B_s = b_all[r0:r0 + batch, :]                                     # (B, d_state)
        C_s = c_all[r0:r0 + batch, :]                                     # (B, d_state)

        # y_t = C·state_t + D*x, with C·state_t = dA*(C·state_{t-1}) + (dt*x)*(B·C)
        y_prev = jnp.sum(prev * C_s[:, :, None], axis=1)                  # (B, d_inner)
        bc_dot = jnp.sum(B_s * C_s, axis=-1, keepdims=True)               # (B, 1)
        y_scr[r0:r0 + batch, :] = dA_s * y_prev + dtx_s * bc_dot + dx_all[r0:r0 + batch, :]

        new_state = prev * dA_s[:, None, :] + dtx_s[:, None, :] * B_s[:, :, None]
        states_ref[s] = new_state.astype(states_ref.dtype)
        prev = new_state
    state_scr[...] = prev                                                 # carry to the next block

    # RMSNormGated (norm_before_gate=False): normalize(y * silu(z)) * w, then out_proj.
    g = y_scr[...] * sz_all
    g = g * jax.lax.rsqrt(jnp.mean(g * g, axis=-1, keepdims=True) + eps) * norm_w_ref[...]
    out_ref[...] = jnp.dot(g.astype(wout_ref.dtype), wout_ref[...],
                           preferred_element_type=jnp.float32)            # (R, d_model)


def open_mamba_forward(seq, params, *, d_state, d_conv, expand, headdim,
                       eps=1e-5, t_blk=4, matmul_dtype=jnp.bfloat16,
                       states_dtype=jnp.float32):
    B, T, d_model = seq.shape
    d_inner = expand * d_model
    nheads = d_inner // headdim
    conv_dim = d_inner + 2 * d_state

    # rows per grid block must keep the sublane dim a multiple of 8
    t_blk = max(1, int(t_blk))
    while (t_blk * B) % 8 != 0:
        t_blk += 1
    T_pad = -(-T // t_blk) * t_blk
    rows_blk = t_blk * B

    # ---- glue (plain JAX): layout, weight splitting & casting --------------
    seq_tm = jnp.transpose(seq, (1, 0, 2)).astype(jnp.float32)            # (T, B, d_model)
    if T_pad != T:
        seq_tm = jnp.pad(seq_tm, ((0, T_pad - T), (0, 0), (0, 0)))
    seq_flat = seq_tm.reshape(T_pad * B, d_model).astype(matmul_dtype)    # (T_pad*B, d_model)

    in_w = params["in_proj_w"]                                            # (d_in_proj, d_model)
    wz = in_w[:d_inner]
    wx = in_w[d_inner:2 * d_inner]
    wb = in_w[2 * d_inner:2 * d_inner + d_state]
    wc = in_w[2 * d_inner + d_state:2 * d_inner + 2 * d_state]
    wdt = in_w[d_inner + conv_dim:]

    tap = params["conv_w"][:, 0, -1]                                      # (conv_dim,)
    cb = params["conv_b"]                                                 # (conv_dim,)

    f32 = jnp.float32

    def row(v):
        return jnp.asarray(v)[None, :].astype(f32)

    head2ch = jnp.repeat(jnp.eye(nheads, dtype=f32), headdim, axis=1)     # (nheads, d_inner)
    a_ch = jnp.repeat(-jnp.exp(params["A_log"].astype(f32)), headdim)     # (d_inner,)
    d_ch = jnp.repeat(params["D"].astype(f32), headdim)                   # (d_inner,)

    kernel = functools.partial(_openmamba_block_kernel,
                               t_blk=t_blk, batch=B, eps=eps)

    def const(shape):
        return pl.BlockSpec(shape, lambda i: (0,) * len(shape))

    out, states = pl.pallas_call(
        kernel,
        out_shape=(
            jax.ShapeDtypeStruct((T_pad * B, d_model), jnp.float32),
            jax.ShapeDtypeStruct((T_pad, B, d_state, d_inner), states_dtype),
        ),
        grid_spec=pltpu.PrefetchScalarGridSpec(
            num_scalar_prefetch=0,
            grid=(T_pad // t_blk,),
            in_specs=[
                pl.BlockSpec((rows_blk, d_model), lambda i: (i, 0)),      # seq slab
                const((d_model, d_inner)),                                # wz
                const((d_model, d_inner)),                                # wx
                const((d_model, d_state)),                                # wb
                const((d_model, d_state)),                                # wc
                const((d_model, nheads)),                                 # wdt
                const((1, d_inner)), const((1, d_inner)),                 # tap_x, bias_x
                const((1, d_state)), const((1, d_state)),                 # tap_B, bias_B
                const((1, d_state)), const((1, d_state)),                 # tap_C, bias_C
                const((1, nheads)),                                       # dt_bias
                const((nheads, d_inner)),                                 # head2ch
                const((1, d_inner)), const((1, d_inner)), const((1, d_inner)),  # A, D, norm_w
                const((d_inner, d_model)),                                # out_proj
            ],
            out_specs=(
                pl.BlockSpec((rows_blk, d_model), lambda i: (i, 0)),
                pl.BlockSpec((t_blk, B, d_state, d_inner), lambda i: (i, 0, 0, 0)),
            ),
            scratch_shapes=[
                pltpu.VMEM((B, d_state, d_inner), jnp.float32),           # state carry (lane-dense)
                pltpu.VMEM((rows_blk, d_inner), jnp.float32),             # per-block y buffer
            ],
        ),
        compiler_params=pltpu.CompilerParams(
            dimension_semantics=("arbitrary",),       # sequential: state carried in scratch
            vmem_limit_bytes=48 * 1024 * 1024),
    )(seq_flat,
      wz.T.astype(matmul_dtype), wx.T.astype(matmul_dtype),
      wb.T.astype(matmul_dtype), wc.T.astype(matmul_dtype),
      wdt.T.astype(matmul_dtype),
      row(tap[:d_inner]), row(cb[:d_inner]),
      row(tap[d_inner:d_inner + d_state]), row(cb[d_inner:d_inner + d_state]),
      row(tap[d_inner + d_state:]), row(cb[d_inner + d_state:]),
      row(params["dt_bias"]), head2ch, row(a_ch), row(d_ch), row(params["norm_w"]),
      params["out_proj_w"].T.astype(matmul_dtype))

    # Mirror torch: outputs = cat([(B,1,d_model)]*T, dim=0) -> (T*B, 1, d_model), t-major
    outputs = out[:T * B].reshape(T * B, 1, d_model)
    # states: kernel emits lane-dense (T, B, d_state, d_inner); convert to
    # (T, B, nheads, headdim, d_state) like the reference module.
    states = jnp.transpose(states[:T].reshape(T, B, d_state, nheads, headdim),
                           (0, 1, 3, 4, 2))
    return outputs, states


def reference_forward(seq, params, *, d_state, d_conv, expand, headdim,
                      eps=1e-5, matmul_dtype=jnp.bfloat16):
    """Pure-JAX step-by-step reference (same math as the PyTorch module).

    Matmul operands are cast to `matmul_dtype` (f32 accumulation) to mirror the
    kernel's MXU policy; all other math stays float32.
    """
    B, T, d_model = seq.shape
    d_inner = expand * d_model
    nheads = d_inner // headdim
    conv_dim = d_inner + 2 * d_state
    in_w = params["in_proj_w"].astype(matmul_dtype)
    out_w = params["out_proj_w"].astype(matmul_dtype)
    conv_tap = params["conv_w"][:, 0, -1]
    conv_b = params["conv_b"]
    A = -jnp.exp(params["A_log"])
    Dp = params["D"]
    norm_w = params["norm_w"]

    state = jnp.zeros((B, nheads, headdim, d_state), jnp.float32)
    outs, sts = [], []
    for t in range(T):
        u = seq[:, t, :].astype(matmul_dtype)
        zxbcdt = jnp.dot(u, in_w.T, preferred_element_type=jnp.float32)
        z = zxbcdt[:, :d_inner]
        xBC = zxbcdt[:, d_inner:d_inner + conv_dim]
        dt_raw = zxbcdt[:, d_inner + conv_dim:]
        dt = jax.nn.softplus(dt_raw + params["dt_bias"])
        xBC = xBC * conv_tap + conv_b
        xBC = xBC * jax.nn.sigmoid(xBC)
        x = xBC[:, :d_inner].reshape(B, nheads, headdim)
        Bm = xBC[:, d_inner:d_inner + d_state]
        Cm = xBC[:, d_inner + d_state:]
        dA = jnp.exp(dt * A)
        state = (state * dA[:, :, None, None]
                 + dt[:, :, None, None] * x[:, :, :, None] * Bm[:, None, None, :])
        y = jnp.einsum("bhpn,bn->bhp", state, Cm) + Dp[None, :, None] * x
        y = y.reshape(B, d_inner)
        g = y * (z * jax.nn.sigmoid(z))
        g = g * jax.lax.rsqrt(jnp.mean(g * g, axis=-1, keepdims=True) + eps) * norm_w
        outs.append(jnp.dot(g.astype(matmul_dtype), out_w.T,
                            preferred_element_type=jnp.float32)[:, None, :])
        sts.append(state)
    return jnp.concatenate(outs, axis=0), jnp.stack(sts, axis=0)


if __name__ == "__main__":
    # Module hyper-parameters (small, consistent with the constructor)
    d_model, d_state, d_conv, expand, headdim = 32, 16, 4, 2, 16
    chunk_size, use_mem_eff_path, dropout = 8, False, 0.0   # no effect at seqlen==1 / p=0
    B, T = 2, 8

    d_inner = expand * d_model
    nheads = d_inner // headdim
    conv_dim = d_inner + 2 * d_state
    d_in_proj = 2 * d_inner + 2 * d_state + nheads

    key = jax.random.PRNGKey(0)
    ks = jax.random.split(key, 8)
    params = {
        "in_proj_w": jax.random.normal(ks[0], (d_in_proj, d_model), jnp.float32) * 0.18,
        "conv_w":    jax.random.normal(ks[1], (conv_dim, 1, d_conv), jnp.float32) * 0.3,
        "conv_b":    jax.random.normal(ks[2], (conv_dim,), jnp.float32) * 0.05,
        "dt_bias":   jax.random.uniform(ks[3], (nheads,), jnp.float32, -3.0, -1.0),
        "A_log":     jnp.log(jax.random.uniform(ks[4], (nheads,), jnp.float32, 1.0, 4.0)),
        "D":         jnp.ones((nheads,), jnp.float32),
        "norm_w":    1.0 + 0.1 * jax.random.normal(ks[5], (d_inner,), jnp.float32),
        "out_proj_w": jax.random.normal(ks[6], (d_model, d_inner), jnp.float32) * 0.125,
    }
    seq = jax.random.normal(ks[7], (B, T, d_model), jnp.float32)

    outputs, states = open_mamba_forward(
        seq, params, d_state=d_state, d_conv=d_conv, expand=expand,
        headdim=headdim, t_blk=4)
    jax.block_until_ready((outputs, states))

    ref_out, ref_states = reference_forward(
        seq, params, d_state=d_state, d_conv=d_conv, expand=expand, headdim=headdim)

    assert outputs.shape == (T * B, 1, d_model)
    assert states.shape == (T, B, nheads, headdim, d_state)
    assert jnp.allclose(outputs, ref_out, rtol=1e-2, atol=1e-2)
    assert jnp.allclose(states, ref_states, rtol=1e-2, atol=1e-2)

    print("KERNEL_OK")
</pallas_src>

<mosaic_0001>
module attributes {stable_mosaic.version = 11 : i64} {
  func.func @_openmamba_block_kernel(%arg0: i32, %arg1: memref<8x32xbf16, #tpu.memory_space<vmem>>, %arg2: memref<32x64xbf16, #tpu.memory_space<vmem>>, %arg3: memref<32x64xbf16, #tpu.memory_space<vmem>>, %arg4: memref<32x16xbf16, #tpu.memory_space<vmem>>, %arg5: memref<32x16xbf16, #tpu.memory_space<vmem>>, %arg6: memref<32x4xbf16, #tpu.memory_space<vmem>>, %arg7: memref<1x64xf32, #tpu.memory_space<vmem>>, %arg8: memref<1x64xf32, #tpu.memory_space<vmem>>, %arg9: memref<1x16xf32, #tpu.memory_space<vmem>>, %arg10: memref<1x16xf32, #tpu.memory_space<vmem>>, %arg11: memref<1x16xf32, #tpu.memory_space<vmem>>, %arg12: memref<1x16xf32, #tpu.memory_space<vmem>>, %arg13: memref<1x4xf32, #tpu.memory_space<vmem>>, %arg14: memref<4x64xf32, #tpu.memory_space<vmem>>, %arg15: memref<1x64xf32, #tpu.memory_space<vmem>>, %arg16: memref<1x64xf32, #tpu.memory_space<vmem>>, %arg17: memref<1x64xf32, #tpu.memory_space<vmem>>, %arg18: memref<64x32xbf16, #tpu.memory_space<vmem>>, %arg19: memref<8x32xf32, #tpu.memory_space<vmem>>, %arg20: memref<4x2x16x64xf32, #tpu.memory_space<vmem>>, %arg21: memref<2x16x64xf32, #tpu.memory_space<vmem>>, %arg22: memref<8x64xf32, #tpu.memory_space<vmem>>) attributes {dimension_semantics = [#tpu.dimension_semantics<arbitrary>], iteration_bounds = array<i64: 2>, scalar_prefetch = 0 : i64, scratch_operands = 2 : i64, tpu.core_type = #tpu.core_type<tc>, window_params = [{transform_indices = @transform_0, window_bounds = array<i64: 8, 32>}, {pipeline_mode = #tpu.pipeline_mode<synchronous>, transform_indices = @transform_1, window_bounds = array<i64: 32, 64>}, {pipeline_mode = #tpu.pipeline_mode<synchronous>, transform_indices = @transform_2, window_bounds = array<i64: 32, 64>}, {pipeline_mode = #tpu.pipeline_mode<synchronous>, transform_indices = @transform_3, window_bounds = array<i64: 32, 16>}, {pipeline_mode = #tpu.pipeline_mode<synchronous>, transform_indices = @transform_4, window_bounds = array<i64: 32, 16>}, {pipeline_mode = #tpu.pipeline_mode<synchronous>, transform_indices = @transform_5, window_bounds = array<i64: 32, 4>}, {pipeline_mode = #tpu.pipeline_mode<synchronous>, transform_indices = @transform_6, window_bounds = array<i64: 1, 64>}, {pipeline_mode = #tpu.pipeline_mode<synchronous>, transform_indices = @transform_7, window_bounds = array<i64: 1, 64>}, {pipeline_mode = #tpu.pipeline_mode<synchronous>, transform_indices = @transform_8, window_bounds = array<i64: 1, 16>}, {pipeline_mode = #tpu.pipeline_mode<synchronous>, transform_indices = @transform_9, window_bounds = array<i64: 1, 16>}, {pipeline_mode = #tpu.pipeline_mode<synchronous>, transform_indices = @transform_10, window_bounds = array<i64: 1, 16>}, {pipeline_mode = #tpu.pipeline_mode<synchronous>, transform_indices = @transform_11, window_bounds = array<i64: 1, 16>}, {pipeline_mode = #tpu.pipeline_mode<synchronous>, transform_indices = @transform_12, window_bounds = array<i64: 1, 4>}, {pipeline_mode = #tpu.pipeline_mode<synchronous>, transform_indices = @transform_13, window_bounds = array<i64: 4, 64>}, {pipeline_mode = #tpu.pipeline_mode<synchronous>, transform_indices = @transform_14, window_bounds = array<i64: 1, 64>}, {pipeline_mode = #tpu.pipeline_mode<synchronous>, transform_indices = @transform_15, window_bounds = array<i64: 1, 64>}, {pipeline_mode = #tpu.pipeline_mode<synchronous>, transform_indices = @transform_16, window_bounds = array<i64: 1, 64>}, {pipeline_mode = #tpu.pipeline_mode<synchronous>, transform_indices = @transform_17, window_bounds = array<i64: 64, 32>}, {transform_indices = @transform_18, window_bounds = array<i64: 8, 32>}, {transform_indices = @transform_19, window_bounds = array<i64: 4, 2, 16, 64>}]} {
    %c0_i32 = arith.constant 0 : i32
    %0 = arith.cmpi eq, %arg0, %c0_i32 : i32
    %1 = arith.extui %0 : i1 to i32
    %c0_i32_0 = arith.constant 0 : i32
    %2 = arith.cmpi ne, %1, %c0_i32_0 : i32
    scf.if %2 {
      %cst_88 = arith.constant 0.000000e+00 : f32
      %224 = vector.broadcast %cst_88 : f32 to vector<2x16x64xf32>
      %c0_89 = arith.constant 0 : index
      %c0_90 = arith.constant 0 : index
      %c0_91 = arith.constant 0 : index
      %225 = vector.load %arg21[%c0_89, %c0_90, %c0_91] : memref<2x16x64xf32, #tpu.memory_space<vmem>>, vector<2x16x64xf32>
      tpu.vector_store %arg21[%c0_89, %c0_90, %c0_91], %224 {strides = array<i32>} : memref<2x16x64xf32, #tpu.memory_space<vmem>>, vector<2x16x64xf32>,
    } else {
    }
    %c0 = arith.constant 0 : index
    %c0_1 = arith.constant 0 : index
    %3 = vector.load %arg1[%c0, %c0_1] : memref<8x32xbf16, #tpu.memory_space<vmem>>, vector<8x32xbf16>
    %c0_2 = arith.constant 0 : index
    %c0_3 = arith.constant 0 : index
    %4 = vector.load %arg2[%c0_2, %c0_3] : memref<32x64xbf16, #tpu.memory_space<vmem>>, vector<32x64xbf16>
    %cst = arith.constant dense<0.000000e+00> : vector<8x64xf32>
    %5 = tpu.matmul %3, %4, %cst {dimension_numbers = #tpu.dot_dimension_numbers<[1], [0], [0], [1], [0, 0, 1, 1], [], []>} : vector<8x32xbf16>, vector<32x64xbf16>, vector<8x64xf32> -> vector<8x64xf32>
    %c0_4 = arith.constant 0 : index
    %c0_5 = arith.constant 0 : index
    %6 = vector.load %arg3[%c0_4, %c0_5] : memref<32x64xbf16, #tpu.memory_space<vmem>>, vector<32x64xbf16>
    %cst_6 = arith.constant dense<0.000000e+00> : vector<8x64xf32>
    %7 = tpu.matmul %3, %6, %cst_6 {dimension_numbers = #tpu.dot_dimension_numbers<[1], [0], [0], [1], [0, 0, 1, 1], [], []>} : vector<8x32xbf16>, vector<32x64xbf16>, vector<8x64xf32> -> vector<8x64xf32>
    %c0_7 = arith.constant 0 : index
    %c0_8 = arith.constant 0 : index
    %8 = vector.load %arg4[%c0_7, %c0_8] : memref<32x16xbf16, #tpu.memory_space<vmem>>, vector<32x16xbf16>
    %cst_9 = arith.constant dense<0.000000e+00> : vector<8x16xf32>
    %9 = tpu.matmul %3, %8, %cst_9 {dimension_numbers = #tpu.dot_dimension_numbers<[1], [0], [0], [1], [0, 0, 1, 1], [], []>} : vector<8x32xbf16>, vector<32x16xbf16>, vector<8x16xf32> -> vector<8x16xf32>
    %c0_10 = arith.constant 0 : index
    %c0_11 = arith.constant 0 : index
    %10 = vector.load %arg5[%c0_10, %c0_11] : memref<32x16xbf16, #tpu.memory_space<vmem>>, vector<32x16xbf16>
    %cst_12 = arith.constant dense<0.000000e+00> : vector<8x16xf32>
    %11 = tpu.matmul %3, %10, %cst_12 {dimension_numbers = #tpu.dot_dimension_numbers<[1], [0], [0], [1], [0, 0, 1, 1], [], []>} : vector<8x32xbf16>, vector<32x16xbf16>, vector<8x16xf32> -> vector<8x16xf32>
    %c0_13 = arith.constant 0 : index
    %c0_14 = arith.constant 0 : index
    %12 = vector.load %arg6[%c0_13, %c0_14] : memref<32x4xbf16, #tpu.memory_space<vmem>>, vector<32x4xbf16>
    %cst_15 = arith.constant dense<0.000000e+00> : vector<8x4xf32>
    %13 = tpu.matmul %3, %12, %cst_15 {dimension_numbers = #tpu.dot_dimension_numbers<[1], [0], [0], [1], [0, 0, 1, 1], [], []>} : vector<8x32xbf16>, vector<32x4xbf16>, vector<8x4xf32> -> vector<8x4xf32>
    %c0_16 = arith.constant 0 : index
    %c0_17 = arith.constant 0 : index
    %14 = vector.load %arg7[%c0_16, %c0_17] : memref<1x64xf32, #tpu.memory_space<vmem>>, vector<1x64xf32>
    %15 = vector.broadcast %14 : vector<1x64xf32> to vector<8x64xf32>
    %16 = arith.mulf %7, %15 : vector<8x64xf32>
    %c0_18 = arith.constant 0 : index
    %c0_19 = arith.constant 0 : index
    %17 = vector.load %arg8[%c0_18, %c0_19] : memref<1x64xf32, #tpu.memory_space<vmem>>, vector<1x64xf32>
    %18 = vector.broadcast %17 : vector<1x64xf32> to vector<8x64xf32>
    %19 = arith.addf %16, %18 : vector<8x64xf32>
    %c0_20 = arith.constant 0 : index
    %c0_21 = arith.constant 0 : index
    %20 = vector.load %arg9[%c0_20, %c0_21] : memref<1x16xf32, #tpu.memory_space<vmem>>, vector<1x16xf32>
    %21 = vector.broadcast %20 : vector<1x16xf32> to vector<8x16xf32>
    %22 = arith.mulf %9, %21 : vector<8x16xf32>
    %c0_22 = arith.constant 0 : index
    %c0_23 = arith.constant 0 : index
    %23 = vector.load %arg10[%c0_22, %c0_23] : memref<1x16xf32, #tpu.memory_space<vmem>>, vector<1x16xf32>
    %24 = vector.broadcast %23 : vector<1x16xf32> to vector<8x16xf32>
    %25 = arith.addf %22, %24 : vector<8x16xf32>
    %c0_24 = arith.constant 0 : index
    %c0_25 = arith.constant 0 : index
    %26 = vector.load %arg11[%c0_24, %c0_25] : memref<1x16xf32, #tpu.memory_space<vmem>>, vector<1x16xf32>
    %27 = vector.broadcast %26 : vector<1x16xf32> to vector<8x16xf32>
    %28 = arith.mulf %11, %27 : vector<8x16xf32>
    %c0_26 = arith.constant 0 : index
    %c0_27 = arith.constant 0 : index
    %29 = vector.load %arg12[%c0_26, %c0_27] : memref<1x16xf32, #tpu.memory_space<vmem>>, vector<1x16xf32>
    %30 = vector.broadcast %29 : vector<1x16xf32> to vector<8x16xf32>
    %31 = arith.addf %28, %30 : vector<8x16xf32>
    %32 = arith.negf %19 : vector<8x64xf32>
    %33 = math.exp %32 : vector<8x64xf32>
    %cst_28 = arith.constant 1.000000e+00 : f32
    %34 = vector.broadcast %cst_28 : f32 to vector<8x64xf32>
    %35 = arith.addf %34, %33 : vector<8x64xf32>
    %36 = arith.divf %34, %35 : vector<8x64xf32>
    %37 = arith.mulf %19, %36 : vector<8x64xf32>
    %38 = arith.negf %25 : vector<8x16xf32>
    %39 = math.exp %38 : vector<8x16xf32>
    %cst_29 = arith.constant 1.000000e+00 : f32
    %40 = vector.broadcast %cst_29 : f32 to vector<8x16xf32>
    %41 = arith.addf %40, %39 : vector<8x16xf32>
    %42 = arith.divf %40, %41 : vector<8x16xf32>
    %43 = arith.mulf %25, %42 : vector<8x16xf32>
    %44 = arith.negf %31 : vector<8x16xf32>
    %45 = math.exp %44 : vector<8x16xf32>
    %cst_30 = arith.constant 1.000000e+00 : f32
    %46 = vector.broadcast %cst_30 : f32 to vector<8x16xf32>
    %47 = arith.addf %46, %45 : vector<8x16xf32>
    %48 = arith.divf %46, %47 : vector<8x16xf32>
    %49 = arith.mulf %31, %48 : vector<8x16xf32>
    %c0_31 = arith.constant 0 : index
    %c0_32 = arith.constant 0 : index
    %50 = vector.load %arg13[%c0_31, %c0_32] : memref<1x4xf32, #tpu.memory_space<vmem>>, vector<1x4xf32>
    %51 = vector.broadcast %50 : vector<1x4xf32> to vector<8x4xf32>
    %52 = arith.addf %13, %51 : vector<8x4xf32>
    %cst_33 = arith.constant 0.000000e+00 : f32
    %53 = vector.broadcast %cst_33 : f32 to vector<8x4xf32>
    %54 = arith.maximumf %52, %53 : vector<8x4xf32>
    %55 = vector.broadcast %cst_33 : f32 to vector<8x4xf32>
    %56 = arith.subf %52, %55 : vector<8x4xf32>
    %57 = arith.cmpf one, %56, %56 : vector<8x4xf32>
    %58 = vector.broadcast %cst_33 : f32 to vector<8x4xf32>
    %59 = arith.addf %52, %58 : vector<8x4xf32>
    %60 = math.absf %56 : vector<8x4xf32>
    %cst_34 = arith.constant 0.000000e+00 : f32
    %61 = vector.broadcast %cst_34 : f32 to vector<8x4xf32>
    %62 = arith.subf %61, %60 : vector<8x4xf32>
    %63 = math.exp %62 : vector<8x4xf32>
    %64 = math.log1p %63 : vector<8x4xf32>
    %65 = arith.addf %54, %64 : vector<8x4xf32>
    %66 = arith.select %57, %59, %65 : vector<8x4xi1>, vector<8x4xf32>
    %c0_35 = arith.constant 0 : index
    %c0_36 = arith.constant 0 : index
    %67 = vector.load %arg14[%c0_35, %c0_36] : memref<4x64xf32, #tpu.memory_space<vmem>>, vector<4x64xf32>
    %cst_37 = arith.constant dense<0.000000e+00> : vector<8x64xf32>
    %68 = tpu.matmul %66, %67, %cst_37 {dimension_numbers = #tpu.dot_dimension_numbers<[1], [0], [0], [1], [0, 0, 1, 1], [], []>} : vector<8x4xf32>, vector<4x64xf32>, vector<8x64xf32> -> vector<8x64xf32>
    %c0_38 = arith.constant 0 : index
    %c0_39 = arith.constant 0 : index
    %69 = vector.load %arg15[%c0_38, %c0_39] : memref<1x64xf32, #tpu.memory_space<vmem>>, vector<1x64xf32>
    %70 = vector.broadcast %69 : vector<1x64xf32> to vector<8x64xf32>
    %71 = arith.mulf %68, %70 : vector<8x64xf32>
    %72 = math.exp %71 : vector<8x64xf32>
    %73 = arith.mulf %68, %37 : vector<8x64xf32>
    %c0_40 = arith.constant 0 : index
    %c0_41 = arith.constant 0 : index
    %74 = vector.load %arg16[%c0_40, %c0_41] : memref<1x64xf32, #tpu.memory_space<vmem>>, vector<1x64xf32>
    %75 = vector.broadcast %74 : vector<1x64xf32> to vector<8x64xf32>
    %76 = arith.mulf %75, %37 : vector<8x64xf32>
    %77 = arith.negf %5 : vector<8x64xf32>
    %78 = math.exp %77 : vector<8x64xf32>
    %cst_42 = arith.constant 1.000000e+00 : f32
    %79 = vector.broadcast %cst_42 : f32 to vector<8x64xf32>
    %80 = arith.addf %79, %78 : vector<8x64xf32>
    %81 = arith.divf %79, %80 : vector<8x64xf32>
    %82 = arith.mulf %5, %81 : vector<8x64xf32>
    %c0_43 = arith.constant 0 : index
    %c0_44 = arith.constant 0 : index
    %c0_45 = arith.constant 0 : index
    %83 = vector.load %arg21[%c0_43, %c0_44, %c0_45] : memref<2x16x64xf32, #tpu.memory_space<vmem>>, vector<2x16x64xf32>
    %84 = vector.extract_strided_slice %72 {offsets = [0, 0], sizes = [2, 64], strides = [1, 1]} : vector<8x64xf32> to vector<2x64xf32>
    %85 = vector.extract_strided_slice %73 {offsets = [0, 0], sizes = [2, 64], strides = [1, 1]} : vector<8x64xf32> to vector<2x64xf32>
    %86 = vector.extract_strided_slice %43 {offsets = [0, 0], sizes = [2, 16], strides = [1, 1]} : vector<8x16xf32> to vector<2x16xf32>
    %87 = vector.extract_strided_slice %49 {offsets = [0, 0], sizes = [2, 16], strides = [1, 1]} : vector<8x16xf32> to vector<2x16xf32>
    %88 = vector.shape_cast %87 : vector<2x16xf32> to vector<2x16x1xf32>
    %89 = vector.broadcast %88 : vector<2x16x1xf32> to vector<2x16x64xf32>
    %90 = arith.mulf %83, %89 : vector<2x16x64xf32>
    %cst_46 = arith.constant dense<0.000000e+00> : vector<2x64xf32>
    %91 = vector.multi_reduction <add>, %90, %cst_46 [1] : vector<2x16x64xf32> to vector<2x64xf32>
    %92 = arith.mulf %86, %87 : vector<2x16xf32>
    %cst_47 = arith.constant dense<0.000000e+00> : vector<2xf32>
    %93 = vector.multi_reduction <add>, %92, %cst_47 [1] : vector<2x16xf32> to vector<2xf32>
    %94 = vector.shape_cast %93 : vector<2xf32> to vector<2x1xf32>
    %95 = arith.mulf %84, %91 : vector<2x64xf32>
    %96 = vector.broadcast %94 : vector<2x1xf32> to vector<2x64xf32>
    %97 = arith.mulf %85, %96 : vector<2x64xf32>
    %98 = arith.addf %95, %97 : vector<2x64xf32>
    %99 = vector.extract_strided_slice %76 {offsets = [0, 0], sizes = [2, 64], strides = [1, 1]} : vector<8x64xf32> to vector<2x64xf32>
    %100 = arith.addf %98, %99 : vector<2x64xf32>
    %c0_48 = arith.constant 0 : index
    %c0_49 = arith.constant 0 : index
    %101 = vector.load %arg22[%c0_48, %c0_49] : memref<8x64xf32, #tpu.memory_space<vmem>>, vector<2x64xf32>
    tpu.vector_store %arg22[%c0_48, %c0_49], %100 {strides = array<i32>} : memref<8x64xf32, #tpu.memory_space<vmem>>, vector<2x64xf32>,
    %102 = vector.shape_cast %84 : vector<2x64xf32> to vector<2x1x64xf32>
    %103 = vector.broadcast %102 : vector<2x1x64xf32> to vector<2x16x64xf32>
    %104 = arith.mulf %83, %103 : vector<2x16x64xf32>
    %105 = vector.shape_cast %85 : vector<2x64xf32> to vector<2x1x64xf32>
    %106 = vector.shape_cast %86 : vector<2x16xf32> to vector<2x16x1xf32>
    %107 = vector.broadcast %105 : vector<2x1x64xf32> to vector<2x16x64xf32>
    %108 = vector.broadcast %106 : vector<2x16x1xf32> to vector<2x16x64xf32>
    %109 = arith.mulf %107, %108 : vector<2x16x64xf32>
    %110 = arith.addf %104, %109 : vector<2x16x64xf32>
    %c0_50 = arith.constant 0 : index
    %c0_51 = arith.constant 0 : index
    %c0_52 = arith.constant 0 : index
    %c0_53 = arith.constant 0 : index
    %111 = vector.load %arg20[%c0_50, %c0_51, %c0_52, %c0_53] : memref<4x2x16x64xf32, #tpu.memory_space<vmem>>, vector<1x2x16x64xf32>
    %112 = vector.shape_cast %111 : vector<1x2x16x64xf32> to vector<2x16x64xf32>
    %113 = vector.shape_cast %110 : vector<2x16x64xf32> to vector<1x2x16x64xf32>
    tpu.vector_store %arg20[%c0_50, %c0_51, %c0_52, %c0_53], %113 {strides = array<i32>} : memref<4x2x16x64xf32, #tpu.memory_space<vmem>>, vector<1x2x16x64xf32>,
    %114 = vector.extract_strided_slice %72 {offsets = [2, 0], sizes = [2, 64], strides = [1, 1]} : vector<8x64xf32> to vector<2x64xf32>
    %115 = vector.extract_strided_slice %73 {offsets = [2, 0], sizes = [2, 64], strides = [1, 1]} : vector<8x64xf32> to vector<2x64xf32>
    %116 = vector.extract_strided_slice %43 {offsets = [2, 0], sizes = [2, 16], strides = [1, 1]} : vector<8x16xf32> to vector<2x16xf32>
    %117 = vector.extract_strided_slice %49 {offsets = [2, 0], sizes = [2, 16], strides = [1, 1]} : vector<8x16xf32> to vector<2x16xf32>
    %118 = vector.shape_cast %117 : vector<2x16xf32> to vector<2x16x1xf32>
    %119 = vector.broadcast %118 : vector<2x16x1xf32> to vector<2x16x64xf32>
    %120 = arith.mulf %110, %119 : vector<2x16x64xf32>
    %cst_54 = arith.constant dense<0.000000e+00> : vector<2x64xf32>
    %121 = vector.multi_reduction <add>, %120, %cst_54 [1] : vector<2x16x64xf32> to vector<2x64xf32>
    %122 = arith.mulf %116, %117 : vector<2x16xf32>
    %cst_55 = arith.constant dense<0.000000e+00> : vector<2xf32>
    %123 = vector.multi_reduction <add>, %122, %cst_55 [1] : vector<2x16xf32> to vector<2xf32>
    %124 = vector.shape_cast %123 : vector<2xf32> to vector<2x1xf32>
    %125 = arith.mulf %114, %121 : vector<2x64xf32>
    %126 = vector.broadcast %124 : vector<2x1xf32> to vector<2x64xf32>
    %127 = arith.mulf %115, %126 : vector<2x64xf32>
    %128 = arith.addf %125, %127 : vector<2x64xf32>
    %129 = vector.extract_strided_slice %76 {offsets = [2, 0], sizes = [2, 64], strides = [1, 1]} : vector<8x64xf32> to vector<2x64xf32>
    %130 = arith.addf %128, %129 : vector<2x64xf32>
    %c2 = arith.constant 2 : index
    %c0_56 = arith.constant 0 : index
    %131 = vector.load %arg22[%c2, %c0_56] : memref<8x64xf32, #tpu.memory_space<vmem>>, vector<2x64xf32>
    tpu.vector_store %arg22[%c2, %c0_56], %130 {strides = array<i32>} : memref<8x64xf32, #tpu.memory_space<vmem>>, vector<2x64xf32>,
    %132 = vector.shape_cast %114 : vector<2x64xf32> to vector<2x1x64xf32>
    %133 = vector.broadcast %132 : vector<2x1x64xf32> to vector<2x16x64xf32>
    %134 = arith.mulf %110, %133 : vector<2x16x64xf32>
    %135 = vector.shape_cast %115 : vector<2x64xf32> to vector<2x1x64xf32>
    %136 = vector.shape_cast %116 : vector<2x16xf32> to vector<2x16x1xf32>
    %137 = vector.broadcast %135 : vector<2x1x64xf32> to vector<2x16x64xf32>
    %138 = vector.broadcast %136 : vector<2x16x1xf32> to vector<2x16x64xf32>
    %139 = arith.mulf %137, %138 : vector<2x16x64xf32>
    %140 = arith.addf %134, %139 : vector<2x16x64xf32>
    %c1 = arith.constant 1 : index
    %c0_57 = arith.constant 0 : index
    %c0_58 = arith.constant 0 : index
    %c0_59 = arith.constant 0 : index
    %141 = vector.load %arg20[%c1, %c0_57, %c0_58, %c0_59] : memref<4x2x16x64xf32, #tpu.memory_space<vmem>>, vector<1x2x16x64xf32>
    %142 = vector.shape_cast %141 : vector<1x2x16x64xf32> to vector<2x16x64xf32>
    %143 = vector.shape_cast %140 : vector<2x16x64xf32> to vector<1x2x16x64xf32>
    tpu.vector_store %arg20[%c1, %c0_57, %c0_58, %c0_59], %143 {strides = array<i32>} : memref<4x2x16x64xf32, #tpu.memory_space<vmem>>, vector<1x2x16x64xf32>,
    %144 = vector.extract_strided_slice %72 {offsets = [4, 0], sizes = [2, 64], strides = [1, 1]} : vector<8x64xf32> to vector<2x64xf32>
    %145 = vector.extract_strided_slice %73 {offsets = [4, 0], sizes = [2, 64], strides = [1, 1]} : vector<8x64xf32> to vector<2x64xf32>
    %146 = vector.extract_strided_slice %43 {offsets = [4, 0], sizes = [2, 16], strides = [1, 1]} : vector<8x16xf32> to vector<2x16xf32>
    %147 = vector.extract_strided_slice %49 {offsets = [4, 0], sizes = [2, 16], strides = [1, 1]} : vector<8x16xf32> to vector<2x16xf32>
    %148 = vector.shape_cast %147 : vector<2x16xf32> to vector<2x16x1xf32>
    %149 = vector.broadcast %148 : vector<2x16x1xf32> to vector<2x16x64xf32>
    %150 = arith.mulf %140, %149 : vector<2x16x64xf32>
    %cst_60 = arith.constant dense<0.000000e+00> : vector<2x64xf32>
    %151 = vector.multi_reduction <add>, %150, %cst_60 [1] : vector<2x16x64xf32> to vector<2x64xf32>
    %152 = arith.mulf %146, %147 : vector<2x16xf32>
    %cst_61 = arith.constant dense<0.000000e+00> : vector<2xf32>
    %153 = vector.multi_reduction <add>, %152, %cst_61 [1] : vector<2x16xf32> to vector<2xf32>
    %154 = vector.shape_cast %153 : vector<2xf32> to vector<2x1xf32>
    %155 = arith.mulf %144, %151 : vector<2x64xf32>
    %156 = vector.broadcast %154 : vector<2x1xf32> to vector<2x64xf32>
    %157 = arith.mulf %145, %156 : vector<2x64xf32>
    %158 = arith.addf %155, %157 : vector<2x64xf32>
    %159 = vector.extract_strided_slice %76 {offsets = [4, 0], sizes = [2, 64], strides = [1, 1]} : vector<8x64xf32> to vector<2x64xf32>
    %160 = arith.addf %158, %159 : vector<2x64xf32>
    %c4 = arith.constant 4 : index
    %c0_62 = arith.constant 0 : index
    %161 = vector.load %arg22[%c4, %c0_62] : memref<8x64xf32, #tpu.memory_space<vmem>>, vector<2x64xf32>
    tpu.vector_store %arg22[%c4, %c0_62], %160 {strides = array<i32>} : memref<8x64xf32, #tpu.memory_space<vmem>>, vector<2x64xf32>,
    %162 = vector.shape_cast %144 : vector<2x64xf32> to vector<2x1x64xf32>
    %163 = vector.broadcast %162 : vector<2x1x64xf32> to vector<2x16x64xf32>
    %164 = arith.mulf %140, %163 : vector<2x16x64xf32>
    %165 = vector.shape_cast %145 : vector<2x64xf32> to vector<2x1x64xf32>
    %166 = vector.shape_cast %146 : vector<2x16xf32> to vector<2x16x1xf32>
    %167 = vector.broadcast %165 : vector<2x1x64xf32> to vector<2x16x64xf32>
    %168 = vector.broadcast %166 : vector<2x16x1xf32> to vector<2x16x64xf32>
    %169 = arith.mulf %167, %168 : vector<2x16x64xf32>
    %170 = arith.addf %164, %169 : vector<2x16x64xf32>
    %c2_63 = arith.constant 2 : index
    %c0_64 = arith.constant 0 : index
    %c0_65 = arith.constant 0 : index
    %c0_66 = arith.constant 0 : index
    %171 = vector.load %arg20[%c2_63, %c0_64, %c0_65, %c0_66] : memref<4x2x16x64xf32, #tpu.memory_space<vmem>>, vector<1x2x16x64xf32>
    %172 = vector.shape_cast %171 : vector<1x2x16x64xf32> to vector<2x16x64xf32>
    %173 = vector.shape_cast %170 : vector<2x16x64xf32> to vector<1x2x16x64xf32>
    tpu.vector_store %arg20[%c2_63, %c0_64, %c0_65, %c0_66], %173 {strides = array<i32>} : memref<4x2x16x64xf32, #tpu.memory_space<vmem>>, vector<1x2x16x64xf32>,
    %174 = vector.extract_strided_slice %72 {offsets = [6, 0], sizes = [2, 64], strides = [1, 1]} : vector<8x64xf32> to vector<2x64xf32>
    %175 = vector.extract_strided_slice %73 {offsets = [6, 0], sizes = [2, 64], strides = [1, 1]} : vector<8x64xf32> to vector<2x64xf32>
    %176 = vector.extract_strided_slice %43 {offsets = [6, 0], sizes = [2, 16], strides = [1, 1]} : vector<8x16xf32> to vector<2x16xf32>
    %177 = vector.extract_strided_slice %49 {offsets = [6, 0], sizes = [2, 16], strides = [1, 1]} : vector<8x16xf32> to vector<2x16xf32>
    %178 = vector.shape_cast %177 : vector<2x16xf32> to vector<2x16x1xf32>
    %179 = vector.broadcast %178 : vector<2x16x1xf32> to vector<2x16x64xf32>
    %180 = arith.mulf %170, %179 : vector<2x16x64xf32>
    %cst_67 = arith.constant dense<0.000000e+00> : vector<2x64xf32>
    %181 = vector.multi_reduction <add>, %180, %cst_67 [1] : vector<2x16x64xf32> to vector<2x64xf32>
    %182 = arith.mulf %176, %177 : vector<2x16xf32>
    %cst_68 = arith.constant dense<0.000000e+00> : vector<2xf32>
    %183 = vector.multi_reduction <add>, %182, %cst_68 [1] : vector<2x16xf32> to vector<2xf32>
    %184 = vector.shape_cast %183 : vector<2xf32> to vector<2x1xf32>
    %185 = arith.mulf %174, %181 : vector<2x64xf32>
    %186 = vector.broadcast %184 : vector<2x1xf32> to vector<2x64xf32>
    %187 = arith.mulf %175, %186 : vector<2x64xf32>
    %188 = arith.addf %185, %187 : vector<2x64xf32>
    %189 = vector.extract_strided_slice %76 {offsets = [6, 0], sizes = [2, 64], strides = [1, 1]} : vector<8x64xf32> to vector<2x64xf32>
    %190 = arith.addf %188, %189 : vector<2x64xf32>
    %c6 = arith.constant 6 : index
    %c0_69 = arith.constant 0 : index
    %191 = vector.load %arg22[%c6, %c0_69] : memref<8x64xf32, #tpu.memory_space<vmem>>, vector<2x64xf32>
    tpu.vector_store %arg22[%c6, %c0_69], %190 {strides = array<i32>} : memref<8x64xf32, #tpu.memory_space<vmem>>, vector<2x64xf32>,
    %192 = vector.shape_cast %174 : vector<2x64xf32> to vector<2x1x64xf32>
    %193 = vector.broadcast %192 : vector<2x1x64xf32> to vector<2x16x64xf32>
    %194 = arith.mulf %170, %193 : vector<2x16x64xf32>
    %195 = vector.shape_cast %175 : vector<2x64xf32> to vector<2x1x64xf32>
    %196 = vector.shape_cast %176 : vector<2x16xf32> to vector<2x16x1xf32>
    %197 = vector.broadcast %195 : vector<2x1x64xf32> to vector<2x16x64xf32>
    %198 = vector.broadcast %196 : vector<2x16x1xf32> to vector<2x16x64xf32>
    %199 = arith.mulf %197, %198 : vector<2x16x64xf32>
    %200 = arith.addf %194, %199 : vector<2x16x64xf32>
    %c3 = arith.constant 3 : index
    %c0_70 = arith.constant 0 : index
    %c0_71 = arith.constant 0 : index
    %c0_72 = arith.constant 0 : index
    %201 = vector.load %arg20[%c3, %c0_70, %c0_71, %c0_72] : memref<4x2x16x64xf32, #tpu.memory_space<vmem>>, vector<1x2x16x64xf32>
    %202 = vector.shape_cast %201 : vector<1x2x16x64xf32> to vector<2x16x64xf32>
    %203 = vector.shape_cast %200 : vector<2x16x64xf32> to vector<1x2x16x64xf32>
    tpu.vector_store %arg20[%c3, %c0_70, %c0_71, %c0_72], %203 {strides = array<i32>} : memref<4x2x16x64xf32, #tpu.memory_space<vmem>>, vector<1x2x16x64xf32>,
    %c0_73 = arith.constant 0 : index
    %c0_74 = arith.constant 0 : index
    %c0_75 = arith.constant 0 : index
    %204 = vector.load %arg21[%c0_73, %c0_74, %c0_75] : memref<2x16x64xf32, #tpu.memory_space<vmem>>, vector<2x16x64xf32>
    tpu.vector_store %arg21[%c0_73, %c0_74, %c0_75], %200 {strides = array<i32>} : memref<2x16x64xf32, #tpu.memory_space<vmem>>, vector<2x16x64xf32>,
    %c0_76 = arith.constant 0 : index
    %c0_77 = arith.constant 0 : index
    %205 = vector.load %arg22[%c0_76, %c0_77] : memref<8x64xf32, #tpu.memory_space<vmem>>, vector<8x64xf32>
    %206 = arith.mulf %205, %82 : vector<8x64xf32>
    %207 = arith.mulf %206, %206 : vector<8x64xf32>
    %cst_78 = arith.constant dense<0.000000e+00> : vector<8xf32>
    %208 = vector.multi_reduction <add>, %207, %cst_78 [1] : vector<8x64xf32> to vector<8xf32>
    %209 = vector.shape_cast %208 : vector<8xf32> to vector<8x1xf32>
    %cst_79 = arith.constant 6.400000e+01 : f32
    %210 = vector.broadcast %cst_79 : f32 to vector<8x1xf32>
    %211 = arith.divf %209, %210 : vector<8x1xf32>
    %cst_80 = arith.constant 9.99999974E-6 : f32
    %212 = vector.broadcast %cst_80 : f32 to vector<8x1xf32>
    %213 = arith.addf %211, %212 : vector<8x1xf32>
    %214 = math.rsqrt %213 : vector<8x1xf32>
    %215 = vector.broadcast %214 : vector<8x1xf32> to vector<8x64xf32>
    %216 = arith.mulf %206, %215 : vector<8x64xf32>
    %c0_81 = arith.constant 0 : index
    %c0_82 = arith.constant 0 : index
    %217 = vector.load %arg17[%c0_81, %c0_82] : memref<1x64xf32, #tpu.memory_space<vmem>>, vector<1x64xf32>
    %218 = vector.broadcast %217 : vector<1x64xf32> to vector<8x64xf32>
    %219 = arith.mulf %216, %218 : vector<8x64xf32>
    %220 = arith.truncf %219 : vector<8x64xf32> to vector<8x64xbf16>
    %c0_83 = arith.constant 0 : index
    %c0_84 = arith.constant 0 : index
    %221 = vector.load %arg18[%c0_83, %c0_84] : memref<64x32xbf16, #tpu.memory_space<vmem>>, vector<64x32xbf16>
    %cst_85 = arith.constant dense<0.000000e+00> : vector<8x32xf32>
    %222 = tpu.matmul %220, %221, %cst_85 {dimension_numbers = #tpu.dot_dimension_numbers<[1], [0], [0], [1], [0, 0, 1, 1], [], []>} : vector<8x64xbf16>, vector<64x32xbf16>, vector<8x32xf32> -> vector<8x32xf32>
    %c0_86 = arith.constant 0 : index
    %c0_87 = arith.constant 0 : index
    %223 = vector.load %arg19[%c0_86, %c0_87] : memref<8x32xf32, #tpu.memory_space<vmem>>, vector<8x32xf32>
    tpu.vector_store %arg19[%c0_86, %c0_87], %222 {strides = array<i32>} : memref<8x32xf32, #tpu.memory_space<vmem>>, vector<8x32xf32>,
    return
  }
  func.func @transform_0(%arg0: i32) -> (i32, i32) {
    %c0_i32 = arith.constant 0 : i32
    %c0_i32_0 = arith.constant 0 : i32
    return %arg0, %c0_i32 : i32, i32
  }
  func.func @transform_1(%arg0: i32) -> (i32, i32) {
    %c0_i32 = arith.constant 0 : i32
    %c0_i32_0 = arith.constant 0 : i32
    %c0_i32_1 = arith.constant 0 : i32
    return %c0_i32, %c0_i32_0 : i32, i32
  }
  func.func @transform_2(%arg0: i32) -> (i32, i32) {
    %c0_i32 = arith.constant 0 : i32
    %c0_i32_0 = arith.constant 0 : i32
    %c0_i32_1 = arith.constant 0 : i32
    return %c0_i32, %c0_i32_0 : i32, i32
  }
  func.func @transform_3(%arg0: i32) -> (i32, i32) {
    %c0_i32 = arith.constant 0 : i32
    %c0_i32_0 = arith.constant 0 : i32
    %c0_i32_1 = arith.constant 0 : i32
    return %c0_i32, %c0_i32_0 : i32, i32
  }
  func.func @transform_4(%arg0: i32) -> (i32, i32) {
    %c0_i32 = arith.constant 0 : i32
    %c0_i32_0 = arith.constant 0 : i32
    %c0_i32_1 = arith.constant 0 : i32
    return %c0_i32, %c0_i32_0 : i32, i32
  }
  func.func @transform_5(%arg0: i32) -> (i32, i32) {
    %c0_i32 = arith.constant 0 : i32
    %c0_i32_0 = arith.constant 0 : i32
    %c0_i32_1 = arith.constant 0 : i32
    return %c0_i32, %c0_i32_0 : i32, i32
  }
  func.func @transform_6(%arg0: i32) -> (i32, i32) {
    %c0_i32 = arith.constant 0 : i32
    %c0_i32_0 = arith.constant 0 : i32
    %c0_i32_1 = arith.constant 0 : i32
    return %c0_i32, %c0_i32_0 : i32, i32
  }
  func.func @transform_7(%arg0: i32) -> (i32, i32) {
    %c0_i32 = arith.constant 0 : i32
    %c0_i32_0 = arith.constant 0 : i32
    %c0_i32_1 = arith.constant 0 : i32
    return %c0_i32, %c0_i32_0 : i32, i32
  }
  func.func @transform_8(%arg0: i32) -> (i32, i32) {
    %c0_i32 = arith.constant 0 : i32
    %c0_i32_0 = arith.constant 0 : i32
    %c0_i32_1 = arith.constant 0 : i32
    return %c0_i32, %c0_i32_0 : i32, i32
  }
  func.func @transform_9(%arg0: i32) -> (i32, i32) {
    %c0_i32 = arith.constant 0 : i32
    %c0_i32_0 = arith.constant 0 : i32
    %c0_i32_1 = arith.constant 0 : i32
    return %c0_i32, %c0_i32_0 : i32, i32
  }
  func.func @transform_10(%arg0: i32) -> (i32, i32) {
    %c0_i32 = arith.constant 0 : i32
    %c0_i32_0 = arith.constant 0 : i32
    %c0_i32_1 = arith.constant 0 : i32
    return %c0_i32, %c0_i32_0 : i32, i32
  }
  func.func @transform_11(%arg0: i32) -> (i32, i32) {
    %c0_i32 = arith.constant 0 : i32
    %c0_i32_0 = arith.constant 0 : i32
    %c0_i32_1 = arith.constant 0 : i32
    return %c0_i32, %c0_i32_0 : i32, i32
  }
  func.func @transform_12(%arg0: i32) -> (i32, i32) {
    %c0_i32 = arith.constant 0 : i32
    %c0_i32_0 = arith.constant 0 : i32
    %c0_i32_1 = arith.constant 0 : i32
    return %c0_i32, %c0_i32_0 : i32, i32
  }
  func.func @transform_13(%arg0: i32) -> (i32, i32) {
    %c0_i32 = arith.constant 0 : i32
    %c0_i32_0 = arith.constant 0 : i32
    %c0_i32_1 = arith.constant 0 : i32
    return %c0_i32, %c0_i32_0 : i32, i32
  }
  func.func @transform_14(%arg0: i32) -> (i32, i32) {
    %c0_i32 = arith.constant 0 : i32
    %c0_i32_0 = arith.constant 0 : i32
    %c0_i32_1 = arith.constant 0 : i32
    return %c0_i32, %c0_i32_0 : i32, i32
  }
  func.func @transform_15(%arg0: i32) -> (i32, i32) {
    %c0_i32 = arith.constant 0 : i32
    %c0_i32_0 = arith.constant 0 : i32
    %c0_i32_1 = arith.constant 0 : i32
    return %c0_i32, %c0_i32_0 : i32, i32
  }
  func.func @transform_16(%arg0: i32) -> (i32, i32) {
    %c0_i32 = arith.constant 0 : i32
    %c0_i32_0 = arith.constant 0 : i32
    %c0_i32_1 = arith.constant 0 : i32
    return %c0_i32, %c0_i32_0 : i32, i32
  }
  func.func @transform_17(%arg0: i32) -> (i32, i32) {
    %c0_i32 = arith.constant 0 : i32
    %c0_i32_0 = arith.constant 0 : i32
    %c0_i32_1 = arith.constant 0 : i32
    return %c0_i32, %c0_i32_0 : i32, i32
  }
  func.func @transform_18(%arg0: i32) -> (i32, i32) {
    %c0_i32 = arith.constant 0 : i32
    %c0_i32_0 = arith.constant 0 : i32
    return %arg0, %c0_i32 : i32, i32
  }
  func.func @transform_19(%arg0: i32) -> (i32, i32, i32, i32) {
    %c0_i32 = arith.constant 0 : i32
    %c0_i32_0 = arith.constant 0 : i32
    %c0_i32_1 = arith.constant 0 : i32
    %c0_i32_2 = arith.constant 0 : i32
    return %arg0, %c0_i32, %c0_i32_0, %c0_i32_1 : i32, i32, i32, i32
  }
}

</mosaic_0001>

<llo_original>
// kernel: tpu_custom_call.1
$region0: #{tpu_custom_call.1}
  #allocation0 [shape = 'u32[]', space=smem, size = 0x4, offset = 0x4, fixed_abs, tag = 'smem constant byte address 0x4 - core index']
  #allocation1 [shape = 'u32[72,128]{1,0:T(1,128)}', space=vmem, size = 0x9000, scoped, tag = 'internal scratch']
  #allocation2 [shape = 'f32[2,16,64]{2,1,0:T(8,128)}', space=vmem, size = 0x4000, scoped, tag = 'scratch operand']
  #allocation3 [shape = 'f32[8,64]{1,0:T(8,128)}', space=vmem, size = 0x1000, scoped, tag = 'scratch operand']
  %s0 = inlined_call_operand.vmem [shape: bf16[16,32], index: 0, kind: input, shape index: {}]
  %s1 = inlined_call_operand.vmem [shape: bf16[32,64], index: 1, kind: input, shape index: {}]
  %s2 = inlined_call_operand.vmem [shape: bf16[32,64], index: 2, kind: input, shape index: {}]
  %s3 = inlined_call_operand.vmem [shape: bf16[32,16], index: 3, kind: input, shape index: {}]
  %s4 = inlined_call_operand.vmem [shape: bf16[32,16], index: 4, kind: input, shape index: {}]
  %s5 = inlined_call_operand.vmem [shape: bf16[32,4], index: 5, kind: input, shape index: {}]
  %s6 = inlined_call_operand.vmem [shape: f32[1,64], index: 6, kind: input, shape index: {}]
  %s7 = inlined_call_operand.vmem [shape: f32[1,64], index: 7, kind: input, shape index: {}]
  %s8 = inlined_call_operand.vmem [shape: f32[1,16], index: 8, kind: input, shape index: {}]
  %s9 = inlined_call_operand.vmem [shape: f32[1,16], index: 9, kind: input, shape index: {}]
  %s10 = inlined_call_operand.vmem [shape: f32[1,16], index: 10, kind: input, shape index: {}]
  %s11 = inlined_call_operand.vmem [shape: f32[1,16], index: 11, kind: input, shape index: {}]
  %s12 = inlined_call_operand.vmem [shape: f32[1,4], index: 12, kind: input, shape index: {}]
  %s13 = inlined_call_operand.vmem [shape: f32[4,64], index: 13, kind: input, shape index: {}]
  %s14 = inlined_call_operand.vmem [shape: f32[1,64], index: 14, kind: input, shape index: {}]
  %s15 = inlined_call_operand.vmem [shape: f32[1,64], index: 15, kind: input, shape index: {}]
  %s16 = inlined_call_operand.vmem [shape: f32[1,64], index: 16, kind: input, shape index: {}]
  %s17 = inlined_call_operand.vmem [shape: bf16[64,32], index: 17, kind: input, shape index: {}]
  %s18 = inlined_call_operand.hbm [shape: f32[16,32], index: 18, kind: output, shape index: {0}]
  %s19 = inlined_call_operand.hbm [shape: f32[8,2,16,64], index: 19, kind: output, shape index: {1}]
  %20 = xla_tuple %s18, %s19
  %s21 = sld [smem:[#allocation0]]
  $region117: #{tpu_custom_call.1} parent=0
    _
  %s23 = ssub.s32 1, %s21
  %s24 = scalar_select 0, %s23, %s21
  $region1: #{tpu_custom_call.1} parent=0
    #allocation4 [shape = 'u8[8192]{0}', space=vmem, size = 0x2000, scoped, tag = 'output window, operand 0']
    #allocation5 [shape = 's32[2]{0}', space=sflag, size = 0x8, scoped, tag = 'scoped memory for tpu_custom_call.1']
    #allocation6 [shape = 'u8[131072]{0}', space=vmem, size = 0x20000, scoped, tag = 'output window, operand 1']
    #allocation7 [shape = 's32[2]{0}', space=sflag, size = 0x8, scoped, tag = 'scoped memory for tpu_custom_call.1']
    %25 = vsyncpa [#allocation5], 0
    %s26 = scalar_lea.sflag [#allocation5], 1
    %27 = vsyncpa %s26, 0
    %28 = vsyncpa [#allocation7], 0
    %s29 = scalar_lea.sflag [#allocation7], 1
    %30 = vsyncpa %s29, 0
    loop: start=0, step=1, limit=4
    $region2: #{tpu_custom_call.1} parent=1 // loop_pre_header
      _
    $region3: #{tpu_custom_call.1} parent=1 // loop_header
      %s32 = sphi 0, %s36
      %p33 = scmp.ge.s32.totalorder %s32, 4
      %s42 = sphi 0, %s44
      %s45 = sphi 0, %s42
      %s46 = sphi 0, %s45
      %s62 = sphi 0, %s46
      %s66 = sphi 0, %s66
      %s68 = sphi 0, %s66
      %s69 = sphi 0, %s68
      %s83 = sphi 0, %s69
      %s87 = sphi 0, %s87
      %s89 = sphi 0, %s87
      %s90 = sphi 0, %s89
      %s104 = sphi 0, %s90
      %s108 = sphi 0, %s108
      %s110 = sphi 0, %s108
      %s111 = sphi 0, %s110
      %s125 = sphi 0, %s111
      %s129 = sphi 0, %s129
      %s131 = sphi 0, %s129
      %s132 = sphi 0, %s131
      %s146 = sphi 0, %s132
      %s150 = sphi 0, %s150
      %s152 = sphi 0, %s150
      %s153 = sphi 0, %s152
      %s167 = sphi 0, %s153
      %s171 = sphi 0, %s171
      %s173 = sphi 0, %s171
      %s174 = sphi 0, %s173
      %s188 = sphi 0, %s174
      %s192 = sphi 0, %s192
      %s194 = sphi 0, %s192
      %s195 = sphi 0, %s194
      %s209 = sphi 0, %s195
      %s213 = sphi 0, %s213
      %s215 = sphi 0, %s213
      %s216 = sphi 0, %s215
      %s230 = sphi 0, %s216
      %s234 = sphi 0, %s234
      %s236 = sphi 0, %s234
      %s237 = sphi 0, %s236
      %s251 = sphi 0, %s237
      %s255 = sphi 0, %s255
      %s257 = sphi 0, %s255
      %s258 = sphi 0, %s257
      %s272 = sphi 0, %s258
      %s276 = sphi 0, %s276
      %s278 = sphi 0, %s276
      %s279 = sphi 0, %s278
      %s293 = sphi 0, %s279
      %s297 = sphi 0, %s297
      %s299 = sphi 0, %s297
      %s300 = sphi 0, %s299
      %s314 = sphi 0, %s300
      %s318 = sphi 0, %s318
      %s320 = sphi 0, %s318
      %s321 = sphi 0, %s320
      %s335 = sphi 0, %s321
      %s339 = sphi 0, %s339
      %s341 = sphi 0, %s339
      %s342 = sphi 0, %s341
      %s356 = sphi 0, %s342
      %s360 = sphi 0, %s360
      %s362 = sphi 0, %s360
      %s363 = sphi 0, %s362
      %s377 = sphi 0, %s363
      %s381 = sphi 0, %s381
      %s383 = sphi 0, %s381
      %s384 = sphi 0, %s383
      %s398 = sphi 0, %s384
      %s402 = sphi 0, %s402
      %s404 = sphi 0, %s402
      %s405 = sphi 0, %s404
      %s419 = sphi 0, %s405
      %s425 = sphi 0, %s427
      %s428 = sphi 0, %s425
      %s429 = sphi 0, %s428
      %s445 = sphi 0, %s429
      %s451 = sphi 0, %s453
      %s454 = sphi 0, %s451
      %s455 = sphi 0, %s454
      %s471 = sphi 0, %s455
    $region4: #{tpu_custom_call.1} parent=1 // loop_header_branch
      %35 = sbr.rel (%p33) target = $region8
    $region5: #{tpu_custom_call.1} parent=1 // loop_body
      %s37 = ssub.s32 %s32, 1
      %s38 = ssub.s32 %s32, 2
      %s39 = sadd.s32 %s32, 1
      %s40 = ssub.s32 %s32, %s39
      %p41 = scmp.eq.s32.totalorder %s40, 0
      %s43 = sadd.s32 %s42, 1
      %s44 = scalar_select %p41, %s42, %s43
      %p47 = pneg %p41
      %p48 = scmp.eq.s32.totalorder %s32, 1
      %p49 = por %p47, %p48
      %p50 = scmp.ne.s32.totalorder %s42, %s45
      %p51 = scmp.eq.s32.totalorder %s32, 0
      %p52 = por %p50, %p51
      %p53 = scmp.ne.s32.totalorder %s42, %s45
      %p54 = scmp.eq.s32.totalorder %s37, 1
      %p55 = por %p53, %p54
      %p56 = scmp.ne.s32.totalorder %s45, %s46
      %p57 = scmp.eq.s32.totalorder %s37, 0
      %p58 = por %p56, %p57
      %p59 = scmp.ne.s32.totalorder %s45, %s46
      %p60 = scmp.eq.s32.totalorder %s38, 1
      %p61 = por %p59, %p60
      %p63 = scmp.ne.s32.totalorder %s46, %s62
      %p64 = scmp.eq.s32.totalorder %s38, 0
      %p65 = por %p63, %p64
      %s67 = sadd.s32 %s66, 1
      %p70 = scmp.eq.s32.totalorder %s32, 1
      %p71 = scmp.ne.s32.totalorder %s66, %s68
      %p72 = scmp.eq.s32.totalorder %s32, 0
      %p73 = por %p71, %p72
      %p74 = scmp.ne.s32.totalorder %s66, %s68
      %p75 = scmp.eq.s32.totalorder %s37, 1
      %p76 = por %p74, %p75
      %p77 = scmp.ne.s32.totalorder %s68, %s69
      %p78 = scmp.eq.s32.totalorder %s37, 0
      %p79 = por %p77, %p78
      %p80 = scmp.ne.s32.totalorder %s68, %s69
      %p81 = scmp.eq.s32.totalorder %s38, 1
      %p82 = por %p80, %p81
      %p84 = scmp.ne.s32.totalorder %s69, %s83
      %p85 = scmp.eq.s32.totalorder %s38, 0
      %p86 = por %p84, %p85
      %s88 = sadd.s32 %s87, 1
      %p91 = scmp.eq.s32.totalorder %s32, 1
      %p92 = scmp.ne.s32.totalorder %s87, %s89
      %p93 = scmp.eq.s32.totalorder %s32, 0
      %p94 = por %p92, %p93
      %p95 = scmp.ne.s32.totalorder %s87, %s89
      %p96 = scmp.eq.s32.totalorder %s37, 1
      %p97 = por %p95, %p96
      %p98 = scmp.ne.s32.totalorder %s89, %s90
      %p99 = scmp.eq.s32.totalorder %s37, 0
      %p100 = por %p98, %p99
      %p101 = scmp.ne.s32.totalorder %s89, %s90
      %p102 = scmp.eq.s32.totalorder %s38, 1
      %p103 = por %p101, %p102
      %p105 = scmp.ne.s32.totalorder %s90, %s104
      %p106 = scmp.eq.s32.totalorder %s38, 0
      %p107 = por %p105, %p106
      %s109 = sadd.s32 %s108, 1
      %p112 = scmp.eq.s32.totalorder %s32, 1
      %p113 = scmp.ne.s32.totalorder %s108, %s110
      %p114 = scmp.eq.s32.totalorder %s32, 0
      %p115 = por %p113, %p114
      %p116 = scmp.ne.s32.totalorder %s108, %s110
      %p117 = scmp.eq.s32.totalorder %s37, 1
      %p118 = por %p116, %p117
      %p119 = scmp.ne.s32.totalorder %s110, %s111
      %p120 = scmp.eq.s32.totalorder %s37, 0
      %p121 = por %p119, %p120
      %p122 = scmp.ne.s32.totalorder %s110, %s111
      %p123 = scmp.eq.s32.totalorder %s38, 1
      %p124 = por %p122, %p123
      %p126 = scmp.ne.s32.totalorder %s111, %s125
      %p127 = scmp.eq.s32.totalorder %s38, 0
      %p128 = por %p126, %p127
      %s130 = sadd.s32 %s129, 1
      %p133 = scmp.eq.s32.totalorder %s32, 1
      %p134 = scmp.ne.s32.totalorder %s129, %s131
      %p135 = scmp.eq.s32.totalorder %s32, 0
      %p136 = por %p134, %p135
      %p137 = scmp.ne.s32.totalorder %s129, %s131
      %p138 = scmp.eq.s32.totalorder %s37, 1
      %p139 = por %p137, %p138
      %p140 = scmp.ne.s32.totalorder %s131, %s132
      %p141 = scmp.eq.s32.totalorder %s37, 0
      %p142 = por %p140, %p141
      %p143 = scmp.ne.s32.totalorder %s131, %s132
      %p144 = scmp.eq.s32.totalorder %s38, 1
      %p145 = por %p143, %p144
      %p147 = scmp.ne.s32.totalorder %s132, %s146
      %p148 = scmp.eq.s32.totalorder %s38, 0
      %p149 = por %p147, %p148
      %s151 = sadd.s32 %s150, 1
      %p154 = scmp.eq.s32.totalorder %s32, 1
      %p155 = scmp.ne.s32.totalorder %s150, %s152
      %p156 = scmp.eq.s32.totalorder %s32, 0
      %p157 = por %p155, %p156
      %p158 = scmp.ne.s32.totalorder %s150, %s152
      %p159 = scmp.eq.s32.totalorder %s37, 1
      %p160 = por %p158, %p159
      %p161 = scmp.ne.s32.totalorder %s152, %s153
      %p162 = scmp.eq.s32.totalorder %s37, 0
      %p163 = por %p161, %p162
      %p164 = scmp.ne.s32.totalorder %s152, %s153
      %p165 = scmp.eq.s32.totalorder %s38, 1
      %p166 = por %p164, %p165
      %p168 = scmp.ne.s32.totalorder %s153, %s167
      %p169 = scmp.eq.s32.totalorder %s38, 0
      %p170 = por %p168, %p169
      %s172 = sadd.s32 %s171, 1
      %p175 = scmp.eq.s32.totalorder %s32, 1
      %p176 = scmp.ne.s32.totalorder %s171, %s173
      %p177 = scmp.eq.s32.totalorder %s32, 0
      %p178 = por %p176, %p177
      %p179 = scmp.ne.s32.totalorder %s171, %s173
      %p180 = scmp.eq.s32.totalorder %s37, 1
      %p181 = por %p179, %p180
      %p182 = scmp.ne.s32.totalorder %s173, %s174
      %p183 = scmp.eq.s32.totalorder %s37, 0
      %p184 = por %p182, %p183
      %p185 = scmp.ne.s32.totalorder %s173, %s174
      %p186 = scmp.eq.s32.totalorder %s38, 1
      %p187 = por %p185, %p186
      %p189 = scmp.ne.s32.totalorder %s174, %s188
      %p190 = scmp.eq.s32.totalorder %s38, 0
      %p191 = por %p189, %p190
      %s193 = sadd.s32 %s192, 1
      %p196 = scmp.eq.s32.totalorder %s32, 1
      %p197 = scmp.ne.s32.totalorder %s192, %s194
      %p198 = scmp.eq.s32.totalorder %s32, 0
      %p199 = por %p197, %p198
      %p200 = scmp.ne.s32.totalorder %s192, %s194
      %p201 = scmp.eq.s32.totalorder %s37, 1
      %p202 = por %p200, %p201
      %p203 = scmp.ne.s32.totalorder %s194, %s195
      %p204 = scmp.eq.s32.totalorder %s37, 0
      %p205 = por %p203, %p204
      %p206 = scmp.ne.s32.totalorder %s194, %s195
      %p207 = scmp.eq.s32.totalorder %s38, 1
      %p208 = por %p206, %p207
      %p210 = scmp.ne.s32.totalorder %s195, %s209
      %p211 = scmp.eq.s32.totalorder %s38, 0
      %p212 = por %p210, %p211
      %s214 = sadd.s32 %s213, 1
      %p217 = scmp.eq.s32.totalorder %s32, 1
      %p218 = scmp.ne.s32.totalorder %s213, %s215
      %p219 = scmp.eq.s32.totalorder %s32, 0
      %p220 = por %p218, %p219
      %p221 = scmp.ne.s32.totalorder %s213, %s215
      %p222 = scmp.eq.s32.totalorder %s37, 1
      %p223 = por %p221, %p222
      %p224 = scmp.ne.s32.totalorder %s215, %s216
      %p225 = scmp.eq.s32.totalorder %s37, 0
      %p226 = por %p224, %p225
      %p227 = scmp.ne.s32.totalorder %s215, %s216
      %p228 = scmp.eq.s32.totalorder %s38, 1
      %p229 = por %p227, %p228
      %p231 = scmp.ne.s32.totalorder %s216, %s230
      %p232 = scmp.eq.s32.totalorder %s38, 0
      %p233 = por %p231, %p232
      %s235 = sadd.s32 %s234, 1
      %p238 = scmp.eq.s32.totalorder %s32, 1
      %p239 = scmp.ne.s32.totalorder %s234, %s236
      %p240 = scmp.eq.s32.totalorder %s32, 0
      %p241 = por %p239, %p240
      %p242 = scmp.ne.s32.totalorder %s234, %s236
      %p243 = scmp.eq.s32.totalorder %s37, 1
      %p244 = por %p242, %p243
      %p245 = scmp.ne.s32.totalorder %s236, %s237
      %p246 = scmp.eq.s32.totalorder %s37, 0
      %p247 = por %p245, %p246
      %p248 = scmp.ne.s32.totalorder %s236, %s237
      %p249 = scmp.eq.s32.totalorder %s38, 1
      %p250 = por %p248, %p249
      %p252 = scmp.ne.s32.totalorder %s237, %s251
      %p253 = scmp.eq.s32.totalorder %s38, 0
      %p254 = por %p252, %p253
      %s256 = sadd.s32 %s255, 1
      %p259 = scmp.eq.s32.totalorder %s32, 1
      %p260 = scmp.ne.s32.totalorder %s255, %s257
      %p261 = scmp.eq.s32.totalorder %s32, 0
      %p262 = por %p260, %p261
      %p263 = scmp.ne.s32.totalorder %s255, %s257
      %p264 = scmp.eq.s32.totalorder %s37, 1
      %p265 = por %p263, %p264
      %p266 = scmp.ne.s32.totalorder %s257, %s258
      %p267 = scmp.eq.s32.totalorder %s37, 0
      %p268 = por %p266, %p267
      %p269 = scmp.ne.s32.totalorder %s257, %s258
      %p270 = scmp.eq.s32.totalorder %s38, 1
      %p271 = por %p269, %p270
      %p273 = scmp.ne.s32.totalorder %s258, %s272
      %p274 = scmp.eq.s32.totalorder %s38, 0
      %p275 = por %p273, %p274
      %s277 = sadd.s32 %s276, 1
      %p280 = scmp.eq.s32.totalorder %s32, 1
      %p281 = scmp.ne.s32.totalorder %s276, %s278
      %p282 = scmp.eq.s32.totalorder %s32, 0
      %p283 = por %p281, %p282
      %p284 = scmp.ne.s32.totalorder %s276, %s278
      %p285 = scmp.eq.s32.totalorder %s37, 1
      %p286 = por %p284, %p285
      %p287 = scmp.ne.s32.totalorder %s278, %s279
      %p288 = scmp.eq.s32.totalorder %s37, 0
      %p289 = por %p287, %p288
      %p290 = scmp.ne.s32.totalorder %s278, %s279
      %p291 = scmp.eq.s32.totalorder %s38, 1
      %p292 = por %p290, %p291
      %p294 = scmp.ne.s32.totalorder %s279, %s293
      %p295 = scmp.eq.s32.totalorder %s38, 0
      %p296 = por %p294, %p295
      %s298 = sadd.s32 %s297, 1
      %p301 = scmp.eq.s32.totalorder %s32, 1
      %p302 = scmp.ne.s32.totalorder %s297, %s299
      %p303 = scmp.eq.s32.totalorder %s32, 0
      %p304 = por %p302, %p303
      %p305 = scmp.ne.s32.totalorder %s297, %s299
      %p306 = scmp.eq.s32.totalorder %s37, 1
      %p307 = por %p305, %p306
      %p308 = scmp.ne.s32.totalorder %s299, %s300
      %p309 = scmp.eq.s32.totalorder %s37, 0
      %p310 = por %p308, %p309
      %p311 = scmp.ne.s32.totalorder %s299, %s300
      %p312 = scmp.eq.s32.totalorder %s38, 1
      %p313 = por %p311, %p312
      %p315 = scmp.ne.s32.totalorder %s300, %s314
      %p316 = scmp.eq.s32.totalorder %s38, 0
      %p317 = por %p315, %p316
      %s319 = sadd.s32 %s318, 1
      %p322 = scmp.eq.s32.totalorder %s32, 1
      %p323 = scmp.ne.s32.totalorder %s318, %s320
      %p324 = scmp.eq.s32.totalorder %s32, 0
      %p325 = por %p323, %p324
      %p326 = scmp.ne.s32.totalorder %s318, %s320
      %p327 = scmp.eq.s32.totalorder %s37, 1
      %p328 = por %p326, %p327
      %p329 = scmp.ne.s32.totalorder %s320, %s321
      %p330 = scmp.eq.s32.totalorder %s37, 0
      %p331 = por %p329, %p330
      %p332 = scmp.ne.s32.totalorder %s320, %s321
      %p333 = scmp.eq.s32.totalorder %s38, 1
      %p334 = por %p332, %p333
      %p336 = scmp.ne.s32.totalorder %s321, %s335
      %p337 = scmp.eq.s32.totalorder %s38, 0
      %p338 = por %p336, %p337
      %s340 = sadd.s32 %s339, 1
      %p343 = scmp.eq.s32.totalorder %s32, 1
      %p344 = scmp.ne.s32.totalorder %s339, %s341
      %p345 = scmp.eq.s32.totalorder %s32, 0
      %p346 = por %p344, %p345
      %p347 = scmp.ne.s32.totalorder %s339, %s341
      %p348 = scmp.eq.s32.totalorder %s37, 1
      %p349 = por %p347, %p348
      %p350 = scmp.ne.s32.totalorder %s341, %s342
      %p351 = scmp.eq.s32.totalorder %s37, 0
      %p352 = por %p350, %p351
      %p353 = scmp.ne.s32.totalorder %s341, %s342
      %p354 = scmp.eq.s32.totalorder %s38, 1
      %p355 = por %p353, %p354
      %p357 = scmp.ne.s32.totalorder %s342, %s356
      %p358 = scmp.eq.s32.totalorder %s38, 0
      %p359 = por %p357, %p358
      %s361 = sadd.s32 %s360, 1
      %p364 = scmp.eq.s32.totalorder %s32, 1
      %p365 = scmp.ne.s32.totalorder %s360, %s362
      %p366 = scmp.eq.s32.totalorder %s32, 0
      %p367 = por %p365, %p366
      %p368 = scmp.ne.s32.totalorder %s360, %s362
      %p369 = scmp.eq.s32.totalorder %s37, 1
      %p370 = por %p368, %p369
      %p371 = scmp.ne.s32.totalorder %s362, %s363
      %p372 = scmp.eq.s32.totalorder %s37, 0
      %p373 = por %p371, %p372
      %p374 = scmp.ne.s32.totalorder %s362, %s363
      %p375 = scmp.eq.s32.totalorder %s38, 1
      %p376 = por %p374, %p375
      %p378 = scmp.ne.s32.totalorder %s363, %s377
      %p379 = scmp.eq.s32.totalorder %s38, 0
      %p380 = por %p378, %p379
      %s382 = sadd.s32 %s381, 1
      %p385 = scmp.eq.s32.totalorder %s32, 1
      %p386 = scmp.ne.s32.totalorder %s381, %s383
      %p387 = scmp.eq.s32.totalorder %s32, 0
      %p388 = por %p386, %p387
      %p389 = scmp.ne.s32.totalorder %s381, %s383
      %p390 = scmp.eq.s32.totalorder %s37, 1
      %p391 = por %p389, %p390
      %p392 = scmp.ne.s32.totalorder %s383, %s384
      %p393 = scmp.eq.s32.totalorder %s37, 0
      %p394 = por %p392, %p393
      %p395 = scmp.ne.s32.totalorder %s383, %s384
      %p396 = scmp.eq.s32.totalorder %s38, 1
      %p397 = por %p395, %p396
      %p399 = scmp.ne.s32.totalorder %s384, %s398
      %p400 = scmp.eq.s32.totalorder %s38, 0
      %p401 = por %p399, %p400
      %s403 = sadd.s32 %s402, 1
      %p406 = scmp.eq.s32.totalorder %s32, 1
      %p407 = scmp.ne.s32.totalorder %s402, %s404
      %p408 = scmp.eq.s32.totalorder %s32, 0
      %p409 = por %p407, %p408
      %p410 = scmp.ne.s32.totalorder %s402, %s404
      %p411 = scmp.eq.s32.totalorder %s37, 1
      %p412 = por %p410, %p411
      %p413 = scmp.ne.s32.totalorder %s404, %s405
      %p414 = scmp.eq.s32.totalorder %s37, 0
      %p415 = por %p413, %p414
      %p416 = scmp.ne.s32.totalorder %s404, %s405
      %p417 = scmp.eq.s32.totalorder %s38, 1
      %p418 = por %p416, %p417
      %p420 = scmp.ne.s32.totalorder %s405, %s419
      %p421 = scmp.eq.s32.totalorder %s38, 0
      %p422 = por %p420, %p421
      %s423 = ssub.s32 %s32, %s39
      %p424 = scmp.eq.s32.totalorder %s423, 0
      %s426 = sadd.s32 %s425, 1
      %s427 = scalar_select %p424, %s425, %s426
      %p430 = pneg %p424
      %p431 = scmp.eq.s32.totalorder %s32, 1
      %p432 = por %p430, %p431
      %p433 = scmp.ne.s32.totalorder %s425, %s428
      %p434 = scmp.eq.s32.totalorder %s32, 0
      %p435 = por %p433, %p434
      %p436 = scmp.ne.s32.totalorder %s425, %s428
      %p437 = scmp.eq.s32.totalorder %s37, 1
      %p438 = por %p436, %p437
      %p439 = scmp.ne.s32.totalorder %s428, %s429
      %p440 = scmp.eq.s32.totalorder %s37, 0
      %p441 = por %p439, %p440
      %p442 = scmp.ne.s32.totalorder %s428, %s429
      %p443 = scmp.eq.s32.totalorder %s38, 1
      %p444 = por %p442, %p443
      %p446 = scmp.ne.s32.totalorder %s429, %s445
      %p447 = scmp.eq.s32.totalorder %s38, 0
      %p448 = por %p446, %p447
      %s449 = ssub.s32 %s32, %s39
      %p450 = scmp.eq.s32.totalorder %s449, 0
      %s452 = sadd.s32 %s451, 1
      %s453 = scalar_select %p450, %s451, %s452
      %p456 = pneg %p450
      %p457 = scmp.eq.s32.totalorder %s32, 1
      %p458 = por %p456, %p457
      %p459 = scmp.ne.s32.totalorder %s451, %s454
      %p460 = scmp.eq.s32.totalorder %s32, 0
      %p461 = por %p459, %p460
      %p462 = scmp.ne.s32.totalorder %s451, %s454
      %p463 = scmp.eq.s32.totalorder %s37, 1
      %p464 = por %p462, %p463
      %p465 = scmp.ne.s32.totalorder %s454, %s455
      %p466 = scmp.eq.s32.totalorder %s37, 0
      %p467 = por %p465, %p466
      %p468 = scmp.ne.s32.totalorder %s454, %s455
      %p469 = scmp.eq.s32.totalorder %s38, 1
      %p470 = por %p468, %p469
      %p472 = scmp.ne.s32.totalorder %s455, %s471
      %p473 = scmp.eq.s32.totalorder %s38, 0
      %p474 = por %p472, %p473
      %p475 = scmp.le.s32.totalorder 1, %s32
      %p476 = scmp.lt.s32.totalorder %s32, 3
      %p477 = pnand %p475, %p476
      %p478 = pneg %p477
      // Predicated region
      $region9: #{tpu_custom_call.1} parent=5 // pred_check
        _
      $region10: #{tpu_custom_call.1} parent=5 // pred_check_branch
        %480 = sbr.rel (%p477) target = $region12
      $region11: #{tpu_custom_call.1} parent=5 // pred_region
        %s481 = ssub.s32 %s32, 1
        // Predicated region
        $region13: #{tpu_custom_call.1} parent=11 // pred_check
          %p482 = pneg %p79
        $region14: #{tpu_custom_call.1} parent=11 // pred_check_branch
          %484 = sbr.rel (%p482) target = $region16
        $region15: #{tpu_custom_call.1} parent=11 // pred_region
          _
        $region16: #{tpu_custom_call.1} parent=11 // pred_fallthru
          _
        // Predicated region
        $region17: #{tpu_custom_call.1} parent=11 // pred_check
          %p485 = pneg %p100
        $region18: #{tpu_custom_call.1} parent=11 // pred_check_branch
          %487 = sbr.rel (%p485) target = $region20
        $region19: #{tpu_custom_call.1} parent=11 // pred_region
          _
        $region20: #{tpu_custom_call.1} parent=11 // pred_fallthru
          _
        // Predicated region
        $region21: #{tpu_custom_call.1} parent=11 // pred_check
          %p488 = pneg %p121
        $region22: #{tpu_custom_call.1} parent=11 // pred_check_branch
          %490 = sbr.rel (%p488) target = $region24
        $region23: #{tpu_custom_call.1} parent=11 // pred_region
          _
        $region24: #{tpu_custom_call.1} parent=11 // pred_fallthru
          _
        // Predicated region
        $region25: #{tpu_custom_call.1} parent=11 // pred_check
          %p491 = pneg %p142
        $region26: #{tpu_custom_call.1} parent=11 // pred_check_branch
          %493 = sbr.rel (%p491) target = $region28
        $region27: #{tpu_custom_call.1} parent=11 // pred_region
          _
        $region28: #{tpu_custom_call.1} parent=11 // pred_fallthru
          _
        // Predicated region
        $region29: #{tpu_custom_call.1} parent=11 // pred_check
          %p494 = pneg %p163
        $region30: #{tpu_custom_call.1} parent=11 // pred_check_branch
          %496 = sbr.rel (%p494) target = $region32
        $region31: #{tpu_custom_call.1} parent=11 // pred_region
          _
        $region32: #{tpu_custom_call.1} parent=11 // pred_fallthru
          _
        // Predicated region
        $region33: #{tpu_custom_call.1} parent=11 // pred_check
          %p497 = pneg %p184
        $region34: #{tpu_custom_call.1} parent=11 // pred_check_branch
          %499 = sbr.rel (%p497) target = $region36
        $region35: #{tpu_custom_call.1} parent=11 // pred_region
          _
        $region36: #{tpu_custom_call.1} parent=11 // pred_fallthru
          _
        // Predicated region
        $region37: #{tpu_custom_call.1} parent=11 // pred_check
          %p500 = pneg %p205
        $region38: #{tpu_custom_call.1} parent=11 // pred_check_branch
          %502 = sbr.rel (%p500) target = $region40
        $region39: #{tpu_custom_call.1} parent=11 // pred_region
          _
        $region40: #{tpu_custom_call.1} parent=11 // pred_fallthru
          _
        // Predicated region
        $region41: #{tpu_custom_call.1} parent=11 // pred_check
          %p503 = pneg %p226
        $region42: #{tpu_custom_call.1} parent=11 // pred_check_branch
          %505 = sbr.rel (%p503) target = $region44
        $region43: #{tpu_custom_call.1} parent=11 // pred_region
          _
        $region44: #{tpu_custom_call.1} parent=11 // pred_fallthru
          _
        // Predicated region
        $region45: #{tpu_custom_call.1} parent=11 // pred_check
          %p506 = pneg %p247
        $region46: #{tpu_custom_call.1} parent=11 // pred_check_branch
          %508 = sbr.rel (%p506) target = $region48
        $region47: #{tpu_custom_call.1} parent=11 // pred_region
          _
        $region48: #{tpu_custom_call.1} parent=11 // pred_fallthru
          _
        // Predicated region
        $region49: #{tpu_custom_call.1} parent=11 // pred_check
          %p509 = pneg %p268
        $region50: #{tpu_custom_call.1} parent=11 // pred_check_branch
          %511 = sbr.rel (%p509) target = $region52
        $region51: #{tpu_custom_call.1} parent=11 // pred_region
          _
        $region52: #{tpu_custom_call.1} parent=11 // pred_fallthru
          _
        // Predicated region
        $region53: #{tpu_custom_call.1} parent=11 // pred_check
          %p512 = pneg %p289
        $region54: #{tpu_custom_call.1} parent=11 // pred_check_branch
          %514 = sbr.rel (%p512) target = $region56
        $region55: #{tpu_custom_call.1} parent=11 // pred_region
          _
        $region56: #{tpu_custom_call.1} parent=11 // pred_fallthru
          _
        // Predicated region
        $region57: #{tpu_custom_call.1} parent=11 // pred_check
          %p515 = pneg %p310
        $region58: #{tpu_custom_call.1} parent=11 // pred_check_branch
          %517 = sbr.rel (%p515) target = $region60
        $region59: #{tpu_custom_call.1} parent=11 // pred_region
          _
        $region60: #{tpu_custom_call.1} parent=11 // pred_fallthru
          _
        // Predicated region
        $region61: #{tpu_custom_call.1} parent=11 // pred_check
          %p518 = pneg %p331
        $region62: #{tpu_custom_call.1} parent=11 // pred_check_branch
          %520 = sbr.rel (%p518) target = $region64
        $region63: #{tpu_custom_call.1} parent=11 // pred_region
          _
        $region64: #{tpu_custom_call.1} parent=11 // pred_fallthru
          _
        // Predicated region
        $region65: #{tpu_custom_call.1} parent=11 // pred_check
          %p521 = pneg %p352
        $region66: #{tpu_custom_call.1} parent=11 // pred_check_branch
          %523 = sbr.rel (%p521) target = $region68
        $region67: #{tpu_custom_call.1} parent=11 // pred_region
          _
        $region68: #{tpu_custom_call.1} parent=11 // pred_fallthru
          _
        // Predicated region
        $region69: #{tpu_custom_call.1} parent=11 // pred_check
          %p524 = pneg %p373
        $region70: #{tpu_custom_call.1} parent=11 // pred_check_branch
          %526 = sbr.rel (%p524) target = $region72
        $region71: #{tpu_custom_call.1} parent=11 // pred_region
          _
        $region72: #{tpu_custom_call.1} parent=11 // pred_fallthru
          _
        // Predicated region
        $region73: #{tpu_custom_call.1} parent=11 // pred_check
          %p527 = pneg %p394
        $region74: #{tpu_custom_call.1} parent=11 // pred_check_branch
          %529 = sbr.rel (%p527) target = $region76
        $region75: #{tpu_custom_call.1} parent=11 // pred_region
          _
        $region76: #{tpu_custom_call.1} parent=11 // pred_fallthru
          _
        // Predicated region
        $region77: #{tpu_custom_call.1} parent=11 // pred_check
          %p530 = pneg %p415
        $region78: #{tpu_custom_call.1} parent=11 // pred_check_branch
          %532 = sbr.rel (%p530) target = $region80
        $region79: #{tpu_custom_call.1} parent=11 // pred_region
          _
        $region80: #{tpu_custom_call.1} parent=11 // pred_fallthru
          _
      $region12: #{tpu_custom_call.1} parent=5 // pred_fallthru
        _
      %p533 = scmp.lt.s32.totalorder %s32, 2
      // Predicated region
      $region81: #{tpu_custom_call.1} parent=5 // pred_check
        %p534 = pneg %p533
      $region82: #{tpu_custom_call.1} parent=5 // pred_check_branch
        %536 = sbr.rel (%p534) target = $region84
      $region83: #{tpu_custom_call.1} parent=5 // pred_region
        // Predicated region
        $region85: #{tpu_custom_call.1} parent=83 // pred_check
          %p537 = pneg %p52
        $region86: #{tpu_custom_call.1} parent=83 // pred_check_branch
          %539 = sbr.rel (%p537) target = $region88
        $region87: #{tpu_custom_call.1} parent=83 // pred_region
          %p540 = scmp.lt.s32.totalorder %s32, 1
          %s541 = scalar_select %p540, %s32, 1
          %s542 = smul.addr %s541, 4
          %s543 = scalar_lea.vmem %s0, %s542
        $region88: #{tpu_custom_call.1} parent=83 // pred_fallthru
          _
      $region84: #{tpu_custom_call.1} parent=5 // pred_fallthru
        _
      %p544 = scmp.le.s32.totalorder 1, %s32
      %p545 = scmp.lt.s32.totalorder %s32, 3
      %p546 = pnand %p544, %p545
      %p547 = pneg %p546
      // Predicated region
      $region89: #{tpu_custom_call.1} parent=5 // pred_check
        _
      $region90: #{tpu_custom_call.1} parent=5 // pred_check_branch
        %549 = sbr.rel (%p546) target = $region92
      $region91: #{tpu_custom_call.1} parent=5 // pred_region
        %s550 = ssub.s32 %s32, 1
        %p551 = scmp.lt.s32.totalorder %s37, 1
        %s552 = scalar_select %p551, %s37, 1
        %s553 = smul.addr %s552, 4
        %s554 = scalar_lea.vmem %s0, %s553
        %p555 = pneg %p58
        %p556 = pneg %p55
        %p557 = pneg %p79
        %p558 = pneg %p76
        %p559 = pneg %p100
        %p560 = pneg %p97
        %p561 = pneg %p121
        %p562 = pneg %p118
        %p563 = pneg %p142
        %p564 = pneg %p139
        %p565 = pneg %p163
        %p566 = pneg %p160
        %p567 = pneg %p184
        %p568 = pneg %p181
        %p569 = pneg %p205
        %p570 = pneg %p202
        %p571 = pneg %p226
        %p572 = pneg %p223
        %p573 = pneg %p247
        %p574 = pneg %p244
        %p575 = pneg %p268
        %p576 = pneg %p265
        %p577 = pneg %p289
        %p578 = pneg %p286
        %p579 = pneg %p310
        %p580 = pneg %p307
        %p581 = pneg %p331
        %p582 = pneg %p328
        %p583 = pneg %p352
        %p584 = pneg %p349
        %p585 = pneg %p373
        %p586 = pneg %p370
        %p587 = pneg %p394
        %p588 = pneg %p391
        %p589 = pneg %p415
        %p590 = pneg %p412
        %p591 = pneg %p441
        %p592 = pneg %p438
        %s593 = sand.u32 %s428, 1
        %s594 = scalar_lea.sflag [#allocation5], %s593
        %s595 = sand.u32 %s428, 1
        %s596 = smul.addr %s595, 8
        %s597 = scalar_lea.vmem [#allocation4], %s596
        %p598 = pneg %p467
        %p599 = pneg %p464
        %s600 = sand.u32 %s454, 1
        %s601 = scalar_lea.sflag [#allocation7], %s600
        %s602 = sand.u32 %s454, 1
        %s603 = smul.addr %s602, 128
        %s604 = scalar_lea.vmem [#allocation6], %s603
        %p605 = scmp.lt.s32.totalorder %s37, 1
        %s606 = scalar_select %p605, %s37, 1
        %s607 = smul.addr %s606, 4
        %s608 = scalar_lea.vmem %s0, %s607
        %s609 = smul.u32 4, %s37
        %p611 = scmp.eq.s32.totalorder %s37, 0
        // Predicated region
        $region93: #{tpu_custom_call.1} parent=91 // pred_check
          %p612 = pneg %p611
        $region94: #{tpu_custom_call.1} parent=91 // pred_check_branch
          %614 = sbr.rel (%p612) target = $region96
        $region95: #{tpu_custom_call.1} parent=91 // pred_region
          %vm615 = vcmask 523264
          %616 = vst.msk [vmem:[#allocation2] sm:$0xff] %vm615, 0.0
          %617 = vst.msk [vmem:[#allocation2 + $0x8] sm:$0xff] %vm615, 0.0
          %618 = vst.msk [vmem:[#allocation2 + $0x10] sm:$0xff] %vm615, 0.0
          %619 = vst.msk [vmem:[#allocation2 + $0x18] sm:$0xff] %vm615, 0.0
        $region96: #{tpu_custom_call.1} parent=91 // pred_fallthru
          _
        %v620 = vld [vmem:[%s608] sm:$0xf]
        %v621 = vld [vmem:[%s1] sm:$0xf]
        %v622 = vld [vmem:[%s1 + $0x4] sm:$0xf]
        %v623 = vld [vmem:[%s1 + $0x8] sm:$0xf]
        %v624 = vld [vmem:[%s1 + $0xc] sm:$0xf]
        %v629 = vunpack.c.l.b16 %v621
        %v630 = vunpack.c.l.b16 %v622
        %v631 = vunpack.c.l.b16 %v623
        %v632 = vunpack.c.l.b16 %v624
        %v633 = vpack.c.b16 %v630, %v629
        %v634 = vpack.c.b16 %v632, %v631
        %vm637 = vcmask 261120
        %v639 = vsel %vm637, %v620, 0
        %641 = vmatpush.bf16.msra.mxu0 0
        %642 = vmatpush.bf16.msra.mxu0 0
        %643 = vmatpush.bf16.msra.mxu0 0
        %644 = vmatpush.bf16.msra.mxu0 0
        %645 = vmatpush.bf16.msra.mxu0 0
        %646 = vmatpush.bf16.msra.mxu0 0
        %647 = vmatpush.bf16.msra.mxu0 %v634
        %648 = vmatpush.bf16.msra.mxu0 %v633
        %649 = vmatmul.bf16.gmra.mxu0 %v639
        %v650 = vpop.f32.mrf.mxu0
        %v651 = vadd.f32 0.0, %v650
        %v652 = vpop.f32.mrf.mxu0
        %653 = vdwg.mxu0
        %v654 = vld [vmem:[%s2] sm:$0xf]
        %v655 = vld [vmem:[%s2 + $0x4] sm:$0xf]
        %v656 = vld [vmem:[%s2 + $0x8] sm:$0xf]
        %v657 = vld [vmem:[%s2 + $0xc] sm:$0xf]
        %v662 = vunpack.c.l.b16 %v654
        %v663 = vunpack.c.l.b16 %v655
        %v664 = vunpack.c.l.b16 %v656
        %v665 = vunpack.c.l.b16 %v657
        %v666 = vpack.c.b16 %v663, %v662
        %v667 = vpack.c.b16 %v665, %v664
        %670 = vmatpush.bf16.msra.mxu0 0
        %671 = vmatpush.bf16.msra.mxu0 0
        %672 = vmatpush.bf16.msra.mxu0 0
        %673 = vmatpush.bf16.msra.mxu0 0
        %674 = vmatpush.bf16.msra.mxu0 0
        %675 = vmatpush.bf16.msra.mxu0 0
        %676 = vmatpush.bf16.msra.mxu0 %v667
        %677 = vmatpush.bf16.msra.mxu0 %v666
        %678 = vmatmul.bf16.gmra.mxu0 %v639
        %v679 = vpop.f32.mrf.mxu0
        %v680 = vadd.f32 0.0, %v679
        %v681 = vpop.f32.mrf.mxu0
        %682 = vdwg.mxu0
        %v683 = vld [vmem:[%s3] sm:$0xf]
        %v684 = vld [vmem:[%s3 + $0x4] sm:$0xf]
        %v685 = vld [vmem:[%s3 + $0x8] sm:$0xf]
        %v686 = vld [vmem:[%s3 + $0xc] sm:$0xf]
        %v691 = vunpack.c.l.b16 %v683
        %v692 = vunpack.c.l.b16 %v684
        %v693 = vunpack.c.l.b16 %v685
        %v694 = vunpack.c.l.b16 %v686
        %v695 = vpack.c.b16 %v692, %v691
        %v696 = vpack.c.b16 %v694, %v693
        %699 = vmatpush.bf16.msra.mxu0 0
        %700 = vmatpush.bf16.msra.mxu0 0
        %701 = vmatpush.bf16.msra.mxu0 0
        %702 = vmatpush.bf16.msra.mxu0 0
        %703 = vmatpush.bf16.msra.mxu0 0
        %704 = vmatpush.bf16.msra.mxu0 0
        %705 = vmatpush.bf16.msra.mxu0 %v696
        %706 = vmatpush.bf16.msra.mxu0 %v695
        %707 = vmatmul.bf16.gmra.mxu0 %v639
        %v708 = vpop.f32.mrf.mxu0
        %v709 = vadd.f32 0.0, %v708
        %v710 = vpop.f32.mrf.mxu0
        %711 = vdwg.mxu0
        %v712 = vld [vmem:[%s4] sm:$0xf]
        %v713 = vld [vmem:[%s4 + $0x4] sm:$0xf]
        %v714 = vld [vmem:[%s4 + $0x8] sm:$0xf]
        %v715 = vld [vmem:[%s4 + $0xc] sm:$0xf]
        %v720 = vunpack.c.l.b16 %v712
        %v721 = vunpack.c.l.b16 %v713
        %v722 = vunpack.c.l.b16 %v714
        %v723 = vunpack.c.l.b16 %v715
        %v724 = vpack.c.b16 %v721, %v720
        %v725 = vpack.c.b16 %v723, %v722
        %728 = vmatpush.bf16.msra.mxu0 0
        %729 = vmatpush.bf16.msra.mxu0 0
        %730 = vmatpush.bf16.msra.mxu0 0
        %731 = vmatpush.bf16.msra.mxu0 0
        %732 = vmatpush.bf16.msra.mxu0 0
        %733 = vmatpush.bf16.msra.mxu0 0
        %734 = vmatpush.bf16.msra.mxu0 %v725
        %735 = vmatpush.bf16.msra.mxu0 %v724
        %736 = vmatmul.bf16.gmra.mxu0 %v639
        %v737 = vpop.f32.mrf.mxu0
        %v738 = vadd.f32 0.0, %v737
        %v739 = vpop.f32.mrf.mxu0
        %740 = vdwg.mxu0
        %v741 = vld [vmem:[%s5] sm:$0xf]
        %v742 = vld [vmem:[%s5 + $0x4] sm:$0xf]
        %v743 = vld [vmem:[%s5 + $0x8] sm:$0xf]
        %v744 = vld [vmem:[%s5 + $0xc] sm:$0xf]
        %v745 = vld [vmem:[%s6] sm:$0x1]
        %v747 = vperm.slane %v745, 0
        %v749 = vmul.f32 %v680, %v747
        %v750 = vld [vmem:[%s7] sm:$0x1]
        %v752 = vperm.slane %v750, 0
        %v754 = vadd.f32 %v749, %v752
        %v755 = vld [vmem:[%s8] sm:$0x1]
        %v757 = vperm.slane %v755, 0
        %v759 = vmul.f32 %v709, %v757
        %v760 = vld [vmem:[%s9] sm:$0x1]
        %v762 = vperm.slane %v760, 0
        %v764 = vadd.f32 %v759, %v762
        %v765 = vld [vmem:[%s10] sm:$0x1]
        %v767 = vperm.slane %v765, 0
        %v769 = vmul.f32 %v738, %v767
        %v770 = vld [vmem:[%s11] sm:$0x1]
        %v772 = vperm.slane %v770, 0
        %v774 = vadd.f32 %v769, %v772
        %v775 = vxor.u32 %v754, 2147483648
        %v776 = vmul.f32 %v775, 1.442695
        %v777 = vpow.pop %v776
        %v778 = vadd.f32 %v777, 1.0
        %v779 = vrcp.pop %v778
        %v780 = vmul.f32 %v778, %v779
        %v781 = vsub.f32 1.0, %v780
        %v782 = vmul.f32 %v779, %v781
        %v783 = vadd.f32 %v779, %v782
        %vm784 = vweird.f32 %v778
        %vm785 = vweird.f32 %v779
        %vm786 = vmor %vm784, %vm785
        %v787 = vsel %vm786, %v779, %v783
        %v788 = vand.u32 2147483647, %v778
        %vm789 = vcmp.eq.f32.partialorder %v788, 8.507059e+37
        %v790 = vand.u32 %v778, 2147483648
        %v791 = vor.u32 1.1754944e-38, %v790
        %v792 = vsel %vm789, %v791, %v787
        %v793 = vmul.f32 1.0, %v792
        %v794 = vmul.f32 %v754, %v793
        %v795 = vxor.u32 %v764, 2147483648
        %v796 = vmul.f32 %v795, 1.442695
        %v797 = vpow.pop %v796
        %v798 = vadd.f32 %v797, 1.0
        %v799 = vrcp.pop %v798
        %v800 = vmul.f32 %v798, %v799
        %v801 = vsub.f32 1.0, %v800
        %v802 = vmul.f32 %v799, %v801
        %v803 = vadd.f32 %v799, %v802
        %vm804 = vweird.f32 %v798
        %vm805 = vweird.f32 %v799
        %vm806 = vmor %vm804, %vm805
        %v807 = vsel %vm806, %v799, %v803
        %v808 = vand.u32 2147483647, %v798
        %vm809 = vcmp.eq.f32.partialorder %v808, 8.507059e+37
        %v810 = vand.u32 %v798, 2147483648
        %v811 = vor.u32 1.1754944e-38, %v810
        %v812 = vsel %vm809, %v811, %v807
        %v813 = vmul.f32 1.0, %v812
        %v814 = vmul.f32 %v764, %v813
        %v815 = vxor.u32 %v774, 2147483648
        %v816 = vmul.f32 %v815, 1.442695
        %v817 = vpow.pop %v816
        %v818 = vadd.f32 %v817, 1.0
        %v819 = vrcp.pop %v818
        %v820 = vmul.f32 %v818, %v819
        %v821 = vsub.f32 1.0, %v820
        %v822 = vmul.f32 %v819, %v821
        %v823 = vadd.f32 %v819, %v822
        %vm824 = vweird.f32 %v818
        %vm825 = vweird.f32 %v819
        %vm826 = vmor %vm824, %vm825
        %v827 = vsel %vm826, %v819, %v823
        %v828 = vand.u32 2147483647, %v818
        %vm829 = vcmp.eq.f32.partialorder %v828, 8.507059e+37
        %v830 = vand.u32 %v818, 2147483648
        %v831 = vor.u32 1.1754944e-38, %v830
        %v832 = vsel %vm829, %v831, %v827
        %v833 = vmul.f32 1.0, %v832
        %v834 = vmul.f32 %v774, %v833
        %v835 = vld [vmem:[%s12] sm:$0x1]
        %v837 = vperm.slane %v835, 0
        %v843 = vunpack.c.l.b16 %v741
        %v844 = vunpack.c.l.b16 %v742
        %v845 = vunpack.c.l.b16 %v743
        %v846 = vunpack.c.l.b16 %v744
        %v847 = vpack.c.b16 %v844, %v843
        %v848 = vpack.c.b16 %v846, %v845
        %851 = vmatpush.bf16.msra.mxu0 0
        %852 = vmatpush.bf16.msra.mxu0 0
        %853 = vmatpush.bf16.msra.mxu0 0
        %854 = vmatpush.bf16.msra.mxu0 0
        %855 = vmatpush.bf16.msra.mxu0 0
        %856 = vmatpush.bf16.msra.mxu0 0
        %857 = vmatpush.bf16.msra.mxu0 %v848
        %858 = vmatpush.bf16.msra.mxu0 %v847
        %859 = vmatmul.bf16.gmra.mxu0 %v639
        %v860 = vpop.f32.mrf.mxu0
        %v861 = vadd.f32 %v837, %v860
        %v862 = vpop.f32.mrf.mxu0
        %863 = vdwg.mxu0
        %v864 = vmax.f32 %v861, 0.0
        %vm865 = vcmp.ne.f32.partialorder %v861, %v861
        %v866 = vadd.f32 %v861, 0.0
        %v867 = vand.u32 2147483647, %v861
        %v868 = vsub.f32 0.0, %v867
        %v869 = vmul.f32 %v868, 1.442695
        %v870 = vpow.pop %v869
        %v871 = vadd.f32 %v870, 1.0
        %v872 = vlog2.pop %v871
        %v873 = vmul.f32 %v872, 0.6931472
        %v874 = vmul.f32 -0.5, %v870
        %v875 = vadd.f32 %v874, 1.0
        %v876 = vmul.f32 %v875, %v870
        %v877 = vand.u32 2147483647, %v870
        %vm878 = vcmp.lt.f32.partialorder %v877, 0.0004427343
        %v879 = vsel %vm878, %v876, %v873
        %v880 = vadd.f32 %v864, %v879
        %v881 = vsel %vm865, %v866, %v880
        %v882 = vld [vmem:[%s13] sm:$0xf]
        %vm883 = vcmask 31744
        %v885 = vsel %vm883, %v881, 0
        %vm887 = vcmask 1043456
        %v889 = vsel %vm887, %v882, 0
        %891 = vmatpush.msra.mxu0 0.0
        %892 = vmatpush.msra.mxu0 0.0
        %893 = vmatpush.msra.mxu0 0.0
        %894 = vmatpush.msra.mxu0 0.0
        %895 = vmatpush.msra.mxu0 0.0
        %896 = vmatpush.msra.mxu0 0.0
        %897 = vmatpush.msra.mxu0 0.0
        %898 = vmatpush.msra.mxu0 0.0
        %899 = vmatpush.msra.mxu0 0.0
        %900 = vmatpush.msra.mxu0 0.0
        %901 = vmatpush.msra.mxu0 0.0
        %902 = vmatpush.msra.mxu0 0.0
        %903 = vmatpush.msra.mxu0 0.0
        %904 = vmatpush.msra.mxu0 0.0
        %905 = vmatpush.msra.mxu0 0.0
        %906 = vmatpush.msra.mxu0 %v889
        %907 = vmatmul.f32.gmra.mxu0 %v885
        %v908 = vpop.f32.mrf.mxu0
        %v909 = vadd.f32 0.0, %v908
        %910 = vdwg.mxu0
        %v911 = vld [vmem:[%s14] sm:$0x1]
        %v913 = vperm.slane %v911, 0
        %v915 = vmul.f32 %v909, %v913
        %v916 = vmul.f32 %v915, 1.442695
        %v917 = vpow.pop %v916
        %v918 = vmul.f32 %v909, %v794
        %v919 = vld [vmem:[%s15] sm:$0x1]
        %v921 = vperm.slane %v919, 0
        %v923 = vmul.f32 %v921, %v794
        %v924 = vxor.u32 %v651, 2147483648
        %v925 = vmul.f32 %v924, 1.442695
        %v926 = vpow.pop %v925
        %v927 = vadd.f32 %v926, 1.0
        %v928 = vrcp.pop %v927
        %v929 = vmul.f32 %v927, %v928
        %v930 = vsub.f32 1.0, %v929
        %v931 = vmul.f32 %v928, %v930
        %v932 = vadd.f32 %v928, %v931
        %vm933 = vweird.f32 %v927
        %vm934 = vweird.f32 %v928
        %vm935 = vmor %vm933, %vm934
        %v936 = vsel %vm935, %v928, %v932
        %v937 = vand.u32 2147483647, %v927
        %vm938 = vcmp.eq.f32.partialorder %v937, 8.507059e+37
        %v939 = vand.u32 %v927, 2147483648
        %v940 = vor.u32 1.1754944e-38, %v939
        %v941 = vsel %vm938, %v940, %v936
        %v942 = vmul.f32 1.0, %v941
        %v943 = vmul.f32 %v651, %v942
        %v944 = vld [vmem:[#allocation2] sm:$0xff]
        %v945 = vld [vmem:[#allocation2 + $0x8] sm:$0xff]
        %v946 = vld [vmem:[#allocation2 + $0x10] sm:$0xff]
        %v947 = vld [vmem:[#allocation2 + $0x18] sm:$0xff]
        %v948 = vperm.slane %v834, 0
        %v949 = vlaneseq
        %v950 = vshrl.u32 %v949, 7
        %952 = vset.pattern.permute.xlu0 %v950
        %953 = vperm.xlu0 %952, %v948
        %v954 = vpop.permute.xlu0 %953
        %v955 = vlaneseq
        %v956 = vshrl.u32 %v955, 7
        %v957 = vadd.s32 %v956, 8
        %958 = vset.pattern.permute.xlu0 %v957
        %959 = vperm.xlu0 %958, %v948
        %v960 = vpop.permute.xlu0 %959
        %v961 = vperm.slane %v834, 1
        %v962 = vlaneseq
        %v963 = vshrl.u32 %v962, 7
        %965 = vset.pattern.permute.xlu0 %v963
        %966 = vperm.xlu0 %965, %v961
        %v967 = vpop.permute.xlu0 %966
        %v968 = vlaneseq
        %v969 = vshrl.u32 %v968, 7
        %v970 = vadd.s32 %v969, 8
        %971 = vset.pattern.permute.xlu0 %v970
        %972 = vperm.xlu0 %971, %v961
        %v973 = vpop.permute.xlu0 %972
        %v974 = vmul.f32 %v944, %v954
        %v975 = vmul.f32 %v945, %v960
        %v976 = vmul.f32 %v946, %v967
        %v977 = vmul.f32 %v947, %v973
        %vm978 = vcmask 523264
        %v979 = vsel %vm978, %v974, 0.0
        %v980 = vsel %vm978, %v975, 0.0
        %v981 = vadd.f32 %v979, %v980
        %v982 = vrot.slane %v981, 4
        %v983 = vadd.f32 %v981, %v982
        %v984 = vrot.slane %v983, 2
        %v985 = vadd.f32 %v983, %v984
        %v986 = vrot.slane %v985, 1
        %v987 = vadd.f32 %v985, %v986
        %v988 = vsel %vm978, %v976, 0.0
        %v989 = vsel %vm978, %v977, 0.0
        %v990 = vadd.f32 %v988, %v989
        %v991 = vrot.slane %v990, 4
        %v992 = vadd.f32 %v990, %v991
        %v993 = vrot.slane %v992, 2
        %v994 = vadd.f32 %v992, %v993
        %v995 = vrot.slane %v994, 1
        %v996 = vadd.f32 %v994, %v995
        %v997 = vmul.f32 %v814, %v834
        %vm998 = vcmask 123904
        %v999 = vsel %vm998, %v997, 0.0
        %1000 = vadd.xlane.f32.xlu0 %v999
        %v1001 = vpop.xlane.xlu0 %1000
        %vm1004 = vcmask 1041409
        %v1005 = vsel %vm1004, %v996, %v987
        %v1007 = vmul.f32 %v917, %v1005
        %v1008 = vmul.f32 %v918, %v1001
        %v1009 = vadd.f32 %v1007, %v1008
        %v1010 = vadd.f32 %v1009, %v923
        %vm1011 = vcmask 517120
        %1012 = vst.msk [vmem:[#allocation3] sm:$0x3] %vm1011, %v1010
        %v1014 = vrot.slane %v917, 1
        %v1015 = vperm.slane %v917, 0
        %v1016 = vperm.slane %v1014, 0
        %v1019 = vmul.f32 %v944, %v1015
        %v1020 = vmul.f32 %v945, %v1015
        %v1021 = vmul.f32 %v946, %v1016
        %v1022 = vmul.f32 %v947, %v1016
        %v1024 = vrot.slane %v918, 1
        %v1025 = vperm.slane %v814, 0
        %v1026 = vlaneseq
        %v1027 = vshrl.u32 %v1026, 7
        %1029 = vset.pattern.permute.xlu0 %v1027
        %1030 = vperm.xlu0 %1029, %v1025
        %v1031 = vpop.permute.xlu0 %1030
        %v1032 = vlaneseq
        %v1033 = vshrl.u32 %v1032, 7
        %v1034 = vadd.s32 %v1033, 8
        %1035 = vset.pattern.permute.xlu0 %v1034
        %1036 = vperm.xlu0 %1035, %v1025
        %v1037 = vpop.permute.xlu0 %1036
        %v1038 = vperm.slane %v814, 1
        %v1039 = vlaneseq
        %v1040 = vshrl.u32 %v1039, 7
        %1042 = vset.pattern.permute.xlu0 %v1040
        %1043 = vperm.xlu0 %1042, %v1038
        %v1044 = vpop.permute.xlu0 %1043
        %v1045 = vlaneseq
        %v1046 = vshrl.u32 %v1045, 7
        %v1047 = vadd.s32 %v1046, 8
        %1048 = vset.pattern.permute.xlu0 %v1047
        %1049 = vperm.xlu0 %1048, %v1038
        %v1050 = vpop.permute.xlu0 %1049
        %v1051 = vperm.slane %v918, 0
        %v1052 = vperm.slane %v1024, 0
        %v1055 = vmul.f32 %v1051, %v1031
        %v1056 = vmul.f32 %v1051, %v1037
        %v1057 = vmul.f32 %v1052, %v1044
        %v1058 = vmul.f32 %v1052, %v1050
        %v1059 = vadd.f32 %v1019, %v1055
        %v1060 = vadd.f32 %v1020, %v1056
        %v1061 = vadd.f32 %v1021, %v1057
        %v1062 = vadd.f32 %v1022, %v1058
        %1063 = vst.msk [vmem:[%s604] sm:$0xff] %vm978, %v1059
        %1064 = vst.msk [vmem:[%s604 + $0x8] sm:$0xff] %vm978, %v1060
        %1065 = vst.msk [vmem:[%s604 + $0x10] sm:$0xff] %vm978, %v1061
        %1066 = vst.msk [vmem:[%s604 + $0x18] sm:$0xff] %vm978, %v1062
        %v1067 = vperm.slane %v834, 2
        %v1068 = vlaneseq
        %v1069 = vshrl.u32 %v1068, 7
        %1071 = vset.pattern.permute.xlu0 %v1069
        %1072 = vperm.xlu0 %1071, %v1067
        %v1073 = vpop.permute.xlu0 %1072
        %v1074 = vlaneseq
        %v1075 = vshrl.u32 %v1074, 7
        %v1076 = vadd.s32 %v1075, 8
        %1077 = vset.pattern.permute.xlu0 %v1076
        %1078 = vperm.xlu0 %1077, %v1067
        %v1079 = vpop.permute.xlu0 %1078
        %v1080 = vperm.slane %v834, 3
        %v1081 = vlaneseq
        %v1082 = vshrl.u32 %v1081, 7
        %1084 = vset.pattern.permute.xlu0 %v1082
        %1085 = vperm.xlu0 %1084, %v1080
        %v1086 = vpop.permute.xlu0 %1085
        %v1087 = vlaneseq
        %v1088 = vshrl.u32 %v1087, 7
        %v1089 = vadd.s32 %v1088, 8
        %1090 = vset.pattern.permute.xlu0 %v1089
        %1091 = vperm.xlu0 %1090, %v1080
        %v1092 = vpop.permute.xlu0 %1091
        %v1093 = vmul.f32 %v1059, %v1073
        %v1094 = vmul.f32 %v1060, %v1079
        %v1095 = vmul.f32 %v1061, %v1086
        %v1096 = vmul.f32 %v1062, %v1092
        %v1097 = vsel %vm978, %v1093, 0.0
        %v1098 = vsel %vm978, %v1094, 0.0
        %v1099 = vadd.f32 %v1097, %v1098
        %v1100 = vrot.slane %v1099, 4
        %v1101 = vadd.f32 %v1099, %v1100
        %v1102 = vrot.slane %v1101, 2
        %v1103 = vadd.f32 %v1101, %v1102
        %v1104 = vrot.slane %v1103, 1
        %v1105 = vadd.f32 %v1103, %v1104
        %v1106 = vsel %vm978, %v1095, 0.0
        %v1107 = vsel %vm978, %v1096, 0.0
        %v1108 = vadd.f32 %v1106, %v1107
        %v1109 = vrot.slane %v1108, 4
        %v1110 = vadd.f32 %v1108, %v1109
        %v1111 = vrot.slane %v1110, 2
        %v1112 = vadd.f32 %v1110, %v1111
        %v1113 = vrot.slane %v1112, 1
        %v1114 = vadd.f32 %v1112, %v1113
        %vm1115 = vcmask 125954
        %v1116 = vsel %vm1115, %v997, 0.0
        %1117 = vadd.xlane.f32.xlu0 %v1116
        %v1118 = vpop.xlane.xlu0 %1117
        %vm1121 = vcmask 1043459
        %v1122 = vsel %vm1121, %v1114, %v1105
        %v1124 = vmul.f32 %v917, %v1122
        %v1125 = vmul.f32 %v918, %v1118
        %v1126 = vadd.f32 %v1124, %v1125
        %v1127 = vadd.f32 %v1126, %v923
        %vm1128 = vcmask 519170
        %1129 = vst.msk [vmem:[#allocation3] sm:$0xc] %vm1128, %v1127
        %1130 = vst [vmem:[#allocation1] sm:$0xff] %v917
        %s1131 = scalar_lea.vmem [#allocation1], 2
        %v1132 = vld [vmem:[%s1131] ss:$9 sm:$0xff]
        %s1133 = scalar_lea.vmem [#allocation1], 3
        %v1134 = vld [vmem:[%s1133] ss:$9 sm:$0xff]
        %v1135 = vperm.slane %v1132, 0
        %v1136 = vperm.slane %v1134, 0
        %v1139 = vmul.f32 %v1059, %v1135
        %v1140 = vmul.f32 %v1060, %v1135
        %v1141 = vmul.f32 %v1061, %v1136
        %v1142 = vmul.f32 %v1062, %v1136
        %1143 = vst [vmem:[#allocation1] sm:$0xff] %v918
        %s1144 = scalar_lea.vmem [#allocation1], 2
        %v1145 = vld [vmem:[%s1144] ss:$9 sm:$0xff]
        %s1146 = scalar_lea.vmem [#allocation1], 3
        %v1147 = vld [vmem:[%s1146] ss:$9 sm:$0xff]
        %v1148 = vperm.slane %v814, 2
        %v1149 = vlaneseq
        %v1150 = vshrl.u32 %v1149, 7
        %1152 = vset.pattern.permute.xlu0 %v1150
        %1153 = vperm.xlu0 %1152, %v1148
        %v1154 = vpop.permute.xlu0 %1153
        %v1155 = vlaneseq
        %v1156 = vshrl.u32 %v1155, 7
        %v1157 = vadd.s32 %v1156, 8
        %1158 = vset.pattern.permute.xlu0 %v1157
        %1159 = vperm.xlu0 %1158, %v1148
        %v1160 = vpop.permute.xlu0 %1159
        %v1161 = vperm.slane %v814, 3
        %v1162 = vlaneseq
        %v1163 = vshrl.u32 %v1162, 7
        %1165 = vset.pattern.permute.xlu0 %v1163
        %1166 = vperm.xlu0 %1165, %v1161
        %v1167 = vpop.permute.xlu0 %1166
        %v1168 = vlaneseq
        %v1169 = vshrl.u32 %v1168, 7
        %v1170 = vadd.s32 %v1169, 8
        %1171 = vset.pattern.permute.xlu0 %v1170
        %1172 = vperm.xlu0 %1171, %v1161
        %v1173 = vpop.permute.xlu0 %1172
        %v1174 = vperm.slane %v1145, 0
        %v1175 = vperm.slane %v1147, 0
        %v1178 = vmul.f32 %v1174, %v1154
        %v1179 = vmul.f32 %v1174, %v1160
        %v1180 = vmul.f32 %v1175, %v1167
        %v1181 = vmul.f32 %v1175, %v1173
        %v1182 = vadd.f32 %v1139, %v1178
        %v1183 = vadd.f32 %v1140, %v1179
        %v1184 = vadd.f32 %v1141, %v1180
        %v1185 = vadd.f32 %v1142, %v1181
        %s1186 = scalar_lea.vmem %s604, 32 [#allocation6]
        %1187 = vst.msk [vmem:[%s1186] sm:$0xff] %vm978, %v1182
        %1188 = vst.msk [vmem:[%s1186 + $0x8] sm:$0xff] %vm978, %v1183
        %1189 = vst.msk [vmem:[%s1186 + $0x10] sm:$0xff] %vm978, %v1184
        %1190 = vst.msk [vmem:[%s1186 + $0x18] sm:$0xff] %vm978, %v1185
        %v1191 = vperm.slane %v834, 4
        %v1192 = vlaneseq
        %v1193 = vshrl.u32 %v1192, 7
        %1195 = vset.pattern.permute.xlu0 %v1193
        %1196 = vperm.xlu0 %1195, %v1191
        %v1197 = vpop.permute.xlu0 %1196
        %v1198 = vlaneseq
        %v1199 = vshrl.u32 %v1198, 7
        %v1200 = vadd.s32 %v1199, 8
        %1201 = vset.pattern.permute.xlu0 %v1200
        %1202 = vperm.xlu0 %1201, %v1191
        %v1203 = vpop.permute.xlu0 %1202
        %v1204 = vperm.slane %v834, 5
        %v1205 = vlaneseq
        %v1206 = vshrl.u32 %v1205, 7
        %1208 = vset.pattern.permute.xlu0 %v1206
        %1209 = vperm.xlu0 %1208, %v1204
        %v1210 = vpop.permute.xlu0 %1209
        %v1211 = vlaneseq
        %v1212 = vshrl.u32 %v1211, 7
        %v1213 = vadd.s32 %v1212, 8
        %1214 = vset.pattern.permute.xlu0 %v1213
        %1215 = vperm.xlu0 %1214, %v1204
        %v1216 = vpop.permute.xlu0 %1215
        %v1217 = vmul.f32 %v1182, %v1197
        %v1218 = vmul.f32 %v1183, %v1203
        %v1219 = vmul.f32 %v1184, %v1210
        %v1220 = vmul.f32 %v1185, %v1216
        %v1221 = vsel %vm978, %v1217, 0.0
        %v1222 = vsel %vm978, %v1218, 0.0
        %v1223 = vadd.f32 %v1221, %v1222
        %v1224 = vrot.slane %v1223, 4
        %v1225 = vadd.f32 %v1223, %v1224
        %v1226 = vrot.slane %v1225, 2
        %v1227 = vadd.f32 %v1225, %v1226
        %v1228 = vrot.slane %v1227, 1
        %v1229 = vadd.f32 %v1227, %v1228
        %v1230 = vsel %vm978, %v1219, 0.0
        %v1231 = vsel %vm978, %v1220, 0.0
        %v1232 = vadd.f32 %v1230, %v1231
        %v1233 = vrot.slane %v1232, 4
        %v1234 = vadd.f32 %v1232, %v1233
        %v1235 = vrot.slane %v1234, 2
        %v1236 = vadd.f32 %v1234, %v1235
        %v1237 = vrot.slane %v1236, 1
        %v1238 = vadd.f32 %v1236, %v1237
        %vm1239 = vcmask 128004
        %v1240 = vsel %vm1239, %v997, 0.0
        %1241 = vadd.xlane.f32.xlu0 %v1240
        %v1242 = vpop.xlane.xlu0 %1241
        %vm1245 = vcmask 1045509
        %v1246 = vsel %vm1245, %v1238, %v1229
        %v1248 = vmul.f32 %v917, %v1246
        %v1249 = vmul.f32 %v918, %v1242
        %v1250 = vadd.f32 %v1248, %v1249
        %v1251 = vadd.f32 %v1250, %v923
        %vm1252 = vcmask 521220
        %1253 = vst.msk [vmem:[#allocation3] sm:$0x30] %vm1252, %v1251
        %1254 = vst [vmem:[#allocation1] sm:$0xff] %v917
        %s1255 = scalar_lea.vmem [#allocation1], 4
        %v1256 = vld [vmem:[%s1255] ss:$9 sm:$0xff]
        %s1257 = scalar_lea.vmem [#allocation1], 5
        %v1258 = vld [vmem:[%s1257] ss:$9 sm:$0xff]
        %v1259 = vperm.slane %v1256, 0
        %v1260 = vperm.slane %v1258, 0
        %v1263 = vmul.f32 %v1182, %v1259
        %v1264 = vmul.f32 %v1183, %v1259
        %v1265 = vmul.f32 %v1184, %v1260
        %v1266 = vmul.f32 %v1185, %v1260
        %1267 = vst [vmem:[#allocation1] sm:$0xff] %v918
        %s1268 = scalar_lea.vmem [#allocation1], 4
        %v1269 = vld [vmem:[%s1268] ss:$9 sm:$0xff]
        %s1270 = scalar_lea.vmem [#allocation1], 5
        %v1271 = vld [vmem:[%s1270] ss:$9 sm:$0xff]
        %v1272 = vperm.slane %v814, 4
        %v1273 = vlaneseq
        %v1274 = vshrl.u32 %v1273, 7
        %1276 = vset.pattern.permute.xlu0 %v1274
        %1277 = vperm.xlu0 %1276, %v1272
        %v1278 = vpop.permute.xlu0 %1277
        %v1279 = vlaneseq
        %v1280 = vshrl.u32 %v1279, 7
        %v1281 = vadd.s32 %v1280, 8
        %1282 = vset.pattern.permute.xlu0 %v1281
        %1283 = vperm.xlu0 %1282, %v1272
        %v1284 = vpop.permute.xlu0 %1283
        %v1285 = vperm.slane %v814, 5
        %v1286 = vlaneseq
        %v1287 = vshrl.u32 %v1286, 7
        %1289 = vset.pattern.permute.xlu0 %v1287
        %1290 = vperm.xlu0 %1289, %v1285
        %v1291 = vpop.permute.xlu0 %1290
        %v1292 = vlaneseq
        %v1293 = vshrl.u32 %v1292, 7
        %v1294 = vadd.s32 %v1293, 8
        %1295 = vset.pattern.permute.xlu0 %v1294
        %1296 = vperm.xlu0 %1295, %v1285
        %v1297 = vpop.permute.xlu0 %1296
        %v1298 = vperm.slane %v1269, 0
        %v1299 = vperm.slane %v1271, 0
        %v1302 = vmul.f32 %v1298, %v1278
        %v1303 = vmul.f32 %v1298, %v1284
        %v1304 = vmul.f32 %v1299, %v1291
        %v1305 = vmul.f32 %v1299, %v1297
        %v1306 = vadd.f32 %v1263, %v1302
        %v1307 = vadd.f32 %v1264, %v1303
        %v1308 = vadd.f32 %v1265, %v1304
        %v1309 = vadd.f32 %v1266, %v1305
        %s1310 = scalar_lea.vmem %s604, 64 [#allocation6]
        %1311 = vst.msk [vmem:[%s1310] sm:$0xff] %vm978, %v1306
        %1312 = vst.msk [vmem:[%s1310 + $0x8] sm:$0xff] %vm978, %v1307
        %1313 = vst.msk [vmem:[%s1310 + $0x10] sm:$0xff] %vm978, %v1308
        %1314 = vst.msk [vmem:[%s1310 + $0x18] sm:$0xff] %vm978, %v1309
        %v1315 = vperm.slane %v834, 6
        %v1316 = vlaneseq
        %v1317 = vshrl.u32 %v1316, 7
        %1319 = vset.pattern.permute.xlu0 %v1317
        %1320 = vperm.xlu0 %1319, %v1315
        %v1321 = vpop.permute.xlu0 %1320
        %v1322 = vlaneseq
        %v1323 = vshrl.u32 %v1322, 7
        %v1324 = vadd.s32 %v1323, 8
        %1325 = vset.pattern.permute.xlu0 %v1324
        %1326 = vperm.xlu0 %1325, %v1315
        %v1327 = vpop.permute.xlu0 %1326
        %v1328 = vperm.slane %v834, 7
        %v1329 = vlaneseq
        %v1330 = vshrl.u32 %v1329, 7
        %1332 = vset.pattern.permute.xlu0 %v1330
        %1333 = vperm.xlu0 %1332, %v1328
        %v1334 = vpop.permute.xlu0 %1333
        %v1335 = vlaneseq
        %v1336 = vshrl.u32 %v1335, 7
        %v1337 = vadd.s32 %v1336, 8
        %1338 = vset.pattern.permute.xlu0 %v1337
        %1339 = vperm.xlu0 %1338, %v1328
        %v1340 = vpop.permute.xlu0 %1339
        %v1341 = vmul.f32 %v1306, %v1321
        %v1342 = vmul.f32 %v1307, %v1327
        %v1343 = vmul.f32 %v1308, %v1334
        %v1344 = vmul.f32 %v1309, %v1340
        %v1345 = vsel %vm978, %v1341, 0.0
        %v1346 = vsel %vm978, %v1342, 0.0
        %v1347 = vadd.f32 %v1345, %v1346
        %v1348 = vrot.slane %v1347, 4
        %v1349 = vadd.f32 %v1347, %v1348
        %v1350 = vrot.slane %v1349, 2
        %v1351 = vadd.f32 %v1349, %v1350
        %v1352 = vrot.slane %v1351, 1
        %v1353 = vadd.f32 %v1351, %v1352
        %v1354 = vsel %vm978, %v1343, 0.0
        %v1355 = vsel %vm978, %v1344, 0.0
        %v1356 = vadd.f32 %v1354, %v1355
        %v1357 = vrot.slane %v1356, 4
        %v1358 = vadd.f32 %v1356, %v1357
        %v1359 = vrot.slane %v1358, 2
        %v1360 = vadd.f32 %v1358, %v1359
        %v1361 = vrot.slane %v1360, 1
        %v1362 = vadd.f32 %v1360, %v1361
        %vm1363 = vcmask 130054
        %v1364 = vsel %vm1363, %v997, 0.0
        %1365 = vadd.xlane.f32.xlu0 %v1364
        %v1366 = vpop.xlane.xlu0 %1365
        %vm1369 = vcmask 1047559
        %v1370 = vsel %vm1369, %v1362, %v1353
        %v1372 = vmul.f32 %v917, %v1370
        %v1373 = vmul.f32 %v918, %v1366
        %v1374 = vadd.f32 %v1372, %v1373
        %v1375 = vadd.f32 %v1374, %v923
        %vm1376 = vcmask 523270
        %1377 = vst.msk [vmem:[#allocation3] sm:$0xc0] %vm1376, %v1375
        %1378 = vst [vmem:[#allocation1] sm:$0xff] %v917
        %s1379 = scalar_lea.vmem [#allocation1], 6
        %v1380 = vld [vmem:[%s1379] ss:$9 sm:$0xff]
        %s1381 = scalar_lea.vmem [#allocation1], 7
        %v1382 = vld [vmem:[%s1381] ss:$9 sm:$0xff]
        %v1383 = vperm.slane %v1380, 0
        %v1384 = vperm.slane %v1382, 0
        %v1387 = vmul.f32 %v1306, %v1383
        %v1388 = vmul.f32 %v1307, %v1383
        %v1389 = vmul.f32 %v1308, %v1384
        %v1390 = vmul.f32 %v1309, %v1384
        %1391 = vst [vmem:[#allocation1] sm:$0xff] %v918
        %s1392 = scalar_lea.vmem [#allocation1], 6
        %v1393 = vld [vmem:[%s1392] ss:$9 sm:$0xff]
        %s1394 = scalar_lea.vmem [#allocation1], 7
        %v1395 = vld [vmem:[%s1394] ss:$9 sm:$0xff]
        %v1396 = vperm.slane %v814, 6
        %v1397 = vlaneseq
        %v1398 = vshrl.u32 %v1397, 7
        %1400 = vset.pattern.permute.xlu0 %v1398
        %1401 = vperm.xlu0 %1400, %v1396
        %v1402 = vpop.permute.xlu0 %1401
        %v1403 = vlaneseq
        %v1404 = vshrl.u32 %v1403, 7
        %v1405 = vadd.s32 %v1404, 8
        %1406 = vset.pattern.permute.xlu0 %v1405
        %1407 = vperm.xlu0 %1406, %v1396
        %v1408 = vpop.permute.xlu0 %1407
        %v1409 = vperm.slane %v814, 7
        %v1410 = vlaneseq
        %v1411 = vshrl.u32 %v1410, 7
        %1413 = vset.pattern.permute.xlu0 %v1411
        %1414 = vperm.xlu0 %1413, %v1409
        %v1415 = vpop.permute.xlu0 %1414
        %v1416 = vlaneseq
        %v1417 = vshrl.u32 %v1416, 7
        %v1418 = vadd.s32 %v1417, 8
        %1419 = vset.pattern.permute.xlu0 %v1418
        %1420 = vperm.xlu0 %1419, %v1409
        %v1421 = vpop.permute.xlu0 %1420
        %v1422 = vperm.slane %v1393, 0
        %v1423 = vperm.slane %v1395, 0
        %v1426 = vmul.f32 %v1422, %v1402
        %v1427 = vmul.f32 %v1422, %v1408
        %v1428 = vmul.f32 %v1423, %v1415
        %v1429 = vmul.f32 %v1423, %v1421
        %v1430 = vadd.f32 %v1387, %v1426
        %v1431 = vadd.f32 %v1388, %v1427
        %v1432 = vadd.f32 %v1389, %v1428
        %v1433 = vadd.f32 %v1390, %v1429
        %s1434 = scalar_lea.vmem %s604, 96 [#allocation6]
        %1435 = vst.msk [vmem:[%s1434] sm:$0xff] %vm978, %v1430
        %1436 = vst.msk [vmem:[%s1434 + $0x8] sm:$0xff] %vm978, %v1431
        %1437 = vst.msk [vmem:[%s1434 + $0x10] sm:$0xff] %vm978, %v1432
        %1438 = vst.msk [vmem:[%s1434 + $0x18] sm:$0xff] %vm978, %v1433
        %1439 = vst.msk [vmem:[#allocation2] sm:$0xff] %vm978, %v1430
        %1440 = vst.msk [vmem:[#allocation2 + $0x8] sm:$0xff] %vm978, %v1431
        %1441 = vst.msk [vmem:[#allocation2 + $0x10] sm:$0xff] %vm978, %v1432
        %1442 = vst.msk [vmem:[#allocation2 + $0x18] sm:$0xff] %vm978, %v1433
        %v1443 = vld [vmem:[#allocation3] sm:$0xff]
        %v1444 = vmul.f32 %v1443, %v943
        %v1445 = vmul.f32 %v1444, %v1444
        %v1446 = vsel %vm978, %v1445, 0.0
        %1447 = vadd.xlane.f32.xlu0 %v1446
        %v1448 = vpop.xlane.xlu0 %1447
        %v1449 = vrcp.pop 64.0
        %v1450 = vmul.f32 64.0, %v1449
        %v1451 = vsub.f32 1.0, %v1450
        %v1452 = vmul.f32 %v1449, %v1451
        %v1453 = vadd.f32 %v1449, %v1452
        %vm1454 = vweird.f32 %v1449
        %v1455 = vsel %vm1454, %v1449, %v1453
        %v1456 = vmul.f32 %v1448, %v1455
        %v1457 = vadd.f32 %v1456, 1e-05
        %v1458 = vrsqrt.pop %v1457
        %v1459 = vmul.f32 %v1458, %v1457
        %v1460 = vmul.f32 %v1459, %v1458
        %v1461 = vmul.f32 0.5, %v1460
        %v1462 = vsub.f32 1.5, %v1461
        %v1463 = vmul.f32 %v1458, %v1462
        %vm1464 = vweird.f32 %v1457
        %vm1465 = vweird.f32 %v1458
        %vm1466 = vmor %vm1464, %vm1465
        %v1467 = vsel %vm1466, %v1458, %v1463
        %v1468 = vmul.f32 %v1444, %v1467
        %v1469 = vld [vmem:[%s16] sm:$0x1]
        %v1471 = vperm.slane %v1469, 0
        %v1473 = vmul.f32 %v1468, %v1471
        %v1474 = vpack.c.bf16 %v1473, %v1473
        %v1475 = vld [vmem:[%s17] sm:$0xf]
        %v1476 = vld [vmem:[%s17 + $0x4] sm:$0xf]
        %v1477 = vld [vmem:[%s17 + $0x8] sm:$0xf]
        %v1478 = vld [vmem:[%s17 + $0xc] sm:$0xf]
        %v1479 = vld [vmem:[%s17 + $0x10] sm:$0xf]
        %v1480 = vld [vmem:[%s17 + $0x14] sm:$0xf]
        %v1481 = vld [vmem:[%s17 + $0x18] sm:$0xf]
        %v1482 = vld [vmem:[%s17 + $0x1c] sm:$0xf]
        %v1491 = vunpack.c.l.b16 %v1475
        %v1492 = vunpack.c.l.b16 %v1476
        %v1493 = vunpack.c.l.b16 %v1477
        %v1494 = vunpack.c.l.b16 %v1478
        %v1495 = vunpack.c.l.b16 %v1479
        %v1496 = vunpack.c.l.b16 %v1480
        %v1497 = vunpack.c.l.b16 %v1481
        %v1498 = vunpack.c.l.b16 %v1482
        %v1499 = vpack.c.b16 %v1492, %v1491
        %v1500 = vpack.c.b16 %v1494, %v1493
        %v1501 = vpack.c.b16 %v1496, %v1495
        %v1502 = vpack.c.b16 %v1498, %v1497
        %v1508 = vsel %vm978, %v1474, 0
        %1510 = vmatpush.bf16.msra.mxu0 0
        %1511 = vmatpush.bf16.msra.mxu0 0
        %1512 = vmatpush.bf16.msra.mxu0 0
        %1513 = vmatpush.bf16.msra.mxu0 0
        %1514 = vmatpush.bf16.msra.mxu0 %v1502
        %1515 = vmatpush.bf16.msra.mxu0 %v1501
        %1516 = vmatpush.bf16.msra.mxu0 %v1500
        %1517 = vmatpush.bf16.msra.mxu0 %v1499
        %1518 = vmatmul.bf16.gmra.mxu0 %v1508
        %v1519 = vpop.f32.mrf.mxu0
        %v1520 = vadd.f32 0.0, %v1519
        %v1521 = vpop.f32.mrf.mxu0
        %1522 = vdwg.mxu0
        %1523 = vst.msk [vmem:[%s597] sm:$0xff] %vm637, %v1520
        %s1524 = sand.u32 %s428, 1
        %s1525 = scalar_lea.sflag [#allocation5], %s1524
        %s1526 = sand.u32 %s428, 1
        %s1527 = smul.addr %s1526, 8
        %s1528 = scalar_lea.vmem [#allocation4], %s1527
        %s1529 = sand.u32 %s454, 1
        %s1530 = scalar_lea.sflag [#allocation7], %s1529
        %s1531 = sand.u32 %s454, 1
        %s1532 = smul.addr %s1531, 128
        %s1533 = scalar_lea.vmem [#allocation6], %s1532
        // Predicated region
        $region97: #{tpu_custom_call.1} parent=91 // pred_check
          %p1534 = pneg %p438
        $region98: #{tpu_custom_call.1} parent=91 // pred_check_branch
          %1536 = sbr.rel (%p1534) target = $region100
        $region99: #{tpu_custom_call.1} parent=91 // pred_region
          %1538 = vsyncadd %s1525, 0
          %s1539 = smul.addr %s37, 8
          %s1540 = scalar_lea.hbm %s18, %s1539
          %s1542 = sshll.u32 %s1528, 4
          %s1543 = int_to_ptr.vmem [resolvable:$true] %s1542
          %s1544 = sshll.u32 %s1540, 4
          %s1545 = int_to_ptr.hbm [resolvable:$true] %s1544
          %1547 = dma.vmem_to_hbm [thread:$0]  %s1543, 128, %s1545, %s1525
        $region100: #{tpu_custom_call.1} parent=91 // pred_fallthru
          _
        // Predicated region
        $region101: #{tpu_custom_call.1} parent=91 // pred_check
          %p1548 = pneg %p464
        $region102: #{tpu_custom_call.1} parent=91 // pred_check_branch
          %1550 = sbr.rel (%p1548) target = $region104
        $region103: #{tpu_custom_call.1} parent=91 // pred_region
          %s1551 = smul.u32 4, %s37
          %1553 = vsyncadd %s1530, 0
          %s1554 = smul.addr %s1551, 4
          %s1555 = smul.addr %s1554, 8
          %s1556 = scalar_lea.hbm %s19, %s1555
          %s1557 = sshll.u32 %s1533, 4
          %s1558 = int_to_ptr.vmem [resolvable:$true] %s1557
          %s1559 = sshll.u32 %s1556, 4
          %s1560 = int_to_ptr.hbm [resolvable:$true] %s1559
          %1565 = dma.vmem_to_hbm [thread:$0]  %s1558, 2048, %s1560, %s1530, 128, 128, 8
        $region104: #{tpu_custom_call.1} parent=91 // pred_fallthru
          _
      $region92: #{tpu_custom_call.1} parent=5 // pred_fallthru
        _
      %p1566 = scmp.le.s32.totalorder 2, %s32
      // Predicated region
      $region105: #{tpu_custom_call.1} parent=5 // pred_check
        %p1567 = pneg %p1566
      $region106: #{tpu_custom_call.1} parent=5 // pred_check_branch
        %1569 = sbr.rel (%p1567) target = $region108
      $region107: #{tpu_custom_call.1} parent=5 // pred_region
        %s1570 = ssub.s32 %s32, 2
        // Predicated region
        $region109: #{tpu_custom_call.1} parent=107 // pred_check
          %p1571 = pneg %p444
        $region110: #{tpu_custom_call.1} parent=107 // pred_check_branch
          %1573 = sbr.rel (%p1571) target = $region112
        $region111: #{tpu_custom_call.1} parent=107 // pred_region
          %s1574 = sand.u32 %s429, 1
          %s1575 = scalar_lea.sflag [#allocation5], %s1574
          %s1576 = sand.u32 %s429, 1
          %s1577 = smul.addr %s1576, 8
          %s1578 = scalar_lea.vmem [#allocation4], %s1577
          %1580 = dma.done %s1575, 128
        $region112: #{tpu_custom_call.1} parent=107 // pred_fallthru
          _
        // Predicated region
        $region113: #{tpu_custom_call.1} parent=107 // pred_check
          %p1581 = pneg %p470
        $region114: #{tpu_custom_call.1} parent=107 // pred_check_branch
          %1583 = sbr.rel (%p1581) target = $region116
        $region115: #{tpu_custom_call.1} parent=107 // pred_region
          %s1584 = sand.u32 %s455, 1
          %s1585 = scalar_lea.sflag [#allocation7], %s1584
          %s1586 = sand.u32 %s455, 1
          %s1587 = smul.addr %s1586, 128
          %s1588 = scalar_lea.vmem [#allocation6], %s1587
          %1590 = dma.done %s1585, 2048
        $region116: #{tpu_custom_call.1} parent=107 // pred_fallthru
          _
      $region108: #{tpu_custom_call.1} parent=5 // pred_fallthru
        _
    $region6: #{tpu_custom_call.1} parent=1 // loop_footer
      %s36 = sadd.s32 1, %s32
    $region7: #{tpu_custom_call.1} parent=1 // loop_footer_branch
      %31 = sbr.rel target = $region3
    $region8: #{tpu_custom_call.1} parent=1 // loop_exit
      _
    %1591 = vsyncpa [#allocation5], 1
    %s1592 = scalar_lea.sflag [#allocation5], 1
    %1593 = vsyncpa %s1592, 1
    %1594 = vsyncpa [#allocation7], 1
    %s1595 = scalar_lea.sflag [#allocation7], 1
    %1596 = vsyncpa %s1595, 1

</llo_original>
